<compile_context>
chip_gen: v6e
topology: v6e:2x2x1
jax: 0.10.0
libtpu: 0.0.40
codegen_flags: <defaults>
</compile_context>

<pallas_src>
import functools

import jax
import jax.numpy as jnp
from jax import lax
from jax.experimental import pallas as pl
from jax.experimental.pallas import tpu as pltpu

HIDDEN = 16      # nn.LSTM hidden size
FC1 = 128        # fc1 width
LANE = 128       # TPU lane width; packed-gate block / head output block width
SUBLANE = 8      # f32 sublane count; batch & feature dims padded to multiples of this


def _round_up(n, m):
    return ((n + m - 1) // m) * m


def _lstm_mlp_kernel(x_ref, wih_ref, b_ref, whh_ref, w1_ref, b1_ref, w2_ref,
                     b2_ref, out_ref, hn_ref, cn_ref, gx_ref, hall_ref):
    """LSTM recurrence + hoisted MLP head; everything resident in VMEM.

    Packed gate layout: one 128-lane block per (timestep, batch row) with
      lanes [0,16)=i  [16,32)=f  [32,48)=g  [48,64)=o  [64,128)=zero pad,
    and the i/f/o columns of W_ih / W_hh / bias pre-scaled by 0.5 so that
      sigmoid(u) = 0.5*tanh(u/2) + 0.5
    turns all four gate activations into one tanh + cheap VPU fixups.

    x_ref   : (T, Bp, Dp)   f32   time-major input (batch pad 8, feature pad 8)
    wih_ref : (Dp, 128)     f32   input -> packed gates (i/f/o pre-scaled by 0.5)
    b_ref   : (1, 128)      f32   combined bias b_ih + b_hh, packed + pre-scaled
    whh_ref : (16, 128)     bf16  hidden -> packed gates (pre-scaled)
    w1_ref  : (16, 128)     bf16  fc1 weight (transposed)
    b1_ref  : (1, 128)      f32
    w2_ref  : (128, 128)    bf16  fc2 weight (transposed, cols >= num_outputs zero)
    b2_ref  : (1, 128)      f32
    out_ref : (T, Bp, 128)  f32   lane-dense per-step head output
    hn_ref  : (Bp, 16)      f32   final hidden state
    cn_ref  : (Bp, 16)      f32   final cell state
    gx_ref  : VMEM (T, Bp, 128) f32  scratch: precomputed x @ W_ih + b
    hall_ref: VMEM (T, Bp, 16)  f32  scratch: h_t for every timestep
    """
    T, Bp, Dp = x_ref.shape
    H = HIDDEN

    # ---- (1) input projection for ALL timesteps: one batched MXU matmul ----
    x_flat = x_ref[...].reshape(T * Bp, Dp)
    gx = jnp.dot(x_flat, wih_ref[...], preferred_element_type=jnp.float32) + b_ref[...]
    gx_ref[...] = gx.reshape(T, Bp, LANE)

    # 4 KiB packed recurrent weight = 2 bf16 vregs; held across the unrolled loop.
    whh = whh_ref[...]

    # ---- (2) serial recurrence: one bf16 (Bp,16)@(16,128) MXU pass + 2 tanh/step ----
    def step(t, carry):
        h, c = carry                                          # (Bp, 16) f32 each
        z = jnp.dot(h.astype(jnp.bfloat16), whh,
                    preferred_element_type=jnp.float32) + gx_ref[t]   # (Bp, 128)
        a = jnp.tanh(z)                                       # single EUP stream
        i_g = 0.5 * a[:, 0 * H:1 * H] + 0.5                   # sigmoid via tanh ident.
        f_g = 0.5 * a[:, 1 * H:2 * H] + 0.5
        g_g = a[:, 2 * H:3 * H]
        o_g = 0.5 * a[:, 3 * H:4 * H] + 0.5
        c_new = f_g * c + i_g * g_g
        h_new = o_g * jnp.tanh(c_new)
        hall_ref[t] = h_new
        return h_new, c_new

    # TODO(synk): nonzero initial (h0, c0) support would be plumbed in here.
    h0 = jnp.zeros((Bp, H), jnp.float32)
    c0 = jnp.zeros((Bp, H), jnp.float32)
    h_fin, c_fin = lax.fori_loop(0, T, step, (h0, c0),
                                 unroll=True if T <= 16 else 8)
    hn_ref[...] = h_fin
    cn_ref[...] = c_fin

    # ---- (3) MLP head hoisted out of the loop: two batched bf16 matmuls, one store ----
    h_all = hall_ref[...].reshape(T * Bp, H).astype(jnp.bfloat16)
    z1 = jnp.maximum(
        jnp.dot(h_all, w1_ref[...], preferred_element_type=jnp.float32) + b1_ref[...],
        0.0)
    y = jnp.dot(z1.astype(jnp.bfloat16), w2_ref[...],
                preferred_element_type=jnp.float32) + b2_ref[...]
    out_ref[...] = y.reshape(T, Bp, LANE).astype(out_ref.dtype)


def init_params(key, num_inputs, num_outputs):
    """Deterministic parameter init mirroring the PyTorch module's shapes."""
    ks = jax.random.split(key, 8)
    H = HIDDEN
    bound = 1.0 / jnp.sqrt(H)
    # nn.LSTM params: weight_ih (4H, D_in), weight_hh (4H, H), biases (4H,)
    w_ih = jax.random.uniform(ks[0], (4 * H, num_inputs), jnp.float32, -bound, bound)
    w_hh = jax.random.uniform(ks[1], (4 * H, H), jnp.float32, -bound, bound)
    b_ih = jax.random.uniform(ks[2], (4 * H,), jnp.float32, -bound, bound)
    b_hh = jax.random.uniform(ks[3], (4 * H,), jnp.float32, -bound, bound)

    # fc1: xavier_uniform weight (128, 16)
    lim1 = jnp.sqrt(6.0 / (H + FC1))
    w1 = jax.random.uniform(ks[4], (FC1, H), jnp.float32, -lim1, lim1)
    b1 = jax.random.uniform(ks[5], (FC1,), jnp.float32, -1.0 / jnp.sqrt(H), 1.0 / jnp.sqrt(H))

    # fc2: xavier_uniform weight (num_outputs, 128)
    lim2 = jnp.sqrt(6.0 / (FC1 + num_outputs))
    w2 = jax.random.uniform(ks[6], (num_outputs, FC1), jnp.float32, -lim2, lim2)
    b2 = jax.random.uniform(ks[7], (num_outputs,), jnp.float32,
                            -1.0 / jnp.sqrt(FC1), 1.0 / jnp.sqrt(FC1))
    return dict(w_ih=w_ih, w_hh=w_hh, b_ih=b_ih, b_hh=b_hh,
                w1=w1, b1=b1, w2=w2, b2=b2)


def prepare_kernel_params(params, num_inputs, num_outputs):
    """One-time repack: transpose, combine biases, pack all four gates into a
    single 128-lane block, pre-scale i/f/o by 0.5 (sigmoid-as-tanh identity),
    and cast the recurrent/head matmul weights to bf16. All pad rows/cols are
    zero so padded compute equals the unpadded reference."""
    H = HIDDEN
    assert FC1 == LANE and num_outputs <= LANE, "head blocks hard-coded to 128 lanes"
    Dp = _round_up(max(num_inputs, 1), SUBLANE)

    w_ih = params["w_ih"].astype(jnp.float32)                    # (4H, D_in) [i f g o]
    w_hh = params["w_hh"].astype(jnp.float32)                    # (4H, H)
    b = (params["b_ih"] + params["b_hh"]).astype(jnp.float32)    # (4H,)

    # sigmoid(u) = 0.5*tanh(u/2) + 0.5  ->  pre-scale i/f/o gate rows by 0.5.
    gate_scale = jnp.concatenate(
        [jnp.full((H,), 0.5), jnp.full((H,), 0.5),
         jnp.ones((H,)), jnp.full((H,), 0.5)]).astype(jnp.float32)
    w_ih = w_ih * gate_scale[:, None]
    w_hh = w_hh * gate_scale[:, None]
    b = b * gate_scale

    # Packed layouts: gates occupy lanes [0, 4H) of one 128-lane block.
    wih_p = jnp.zeros((Dp, LANE), jnp.float32).at[:num_inputs, :4 * H].set(w_ih.T)
    whh_p = jnp.zeros((H, LANE), jnp.float32).at[:, :4 * H].set(w_hh.T)
    b_p = jnp.zeros((1, LANE), jnp.float32).at[0, :4 * H].set(b)

    w1_p = params["w1"].T.astype(jnp.float32)                    # (H, 128)
    b1_p = params["b1"].reshape(1, FC1).astype(jnp.float32)
    w2_p = jnp.zeros((FC1, LANE), jnp.float32).at[:, :num_outputs].set(
        params["w2"].T.astype(jnp.float32))
    b2_p = jnp.zeros((1, LANE), jnp.float32).at[0, :num_outputs].set(
        params["b2"].astype(jnp.float32))

    return dict(
        wih=wih_p, b=b_p,                          # f32: one-shot K=Dp projection
        whh=whh_p.astype(jnp.bfloat16),            # bf16 MXU operands, f32 accum
        w1=w1_p.astype(jnp.bfloat16), b1=b1_p,
        w2=w2_p.astype(jnp.bfloat16), b2=b2_p)


@functools.partial(jax.jit, static_argnames=("num_outputs",))
def lstm_forward(x, kparams, num_outputs):
    """x: (B, T, num_inputs) batch_first, like the PyTorch module."""
    B, T, D_in = x.shape
    Bp = _round_up(max(B, SUBLANE), SUBLANE)
    Dp = _round_up(max(D_in, 1), SUBLANE)

    # time-major; pad batch to 8 sublanes, feature dim only to 8 (the 32x-inflated
    # 128-lane x_pad of the previous revision is gone).
    x_tm = jnp.transpose(x, (1, 0, 2)).astype(jnp.float32)         # (T, B, D_in)
    x_tm = jnp.pad(x_tm, ((0, 0), (0, Bp - B), (0, Dp - D_in)))

    # TODO(synk): for large T*B, stream x/out over a T-chunk grid ("arbitrary",
    # h/c carried in persistent scratch, vmem_limit_bytes set explicitly) with
    # chunk sizes derated for v7x's 64 MiB VMEM / v5e's 16 MiB scoped default,
    # and add a batch-parallel leading grid axis ("parallel") to use both v7x
    # TensorCores; unnecessary at this tiny size (single resident program).
    vmem = pl.BlockSpec(memory_space=pltpu.MemorySpace.VMEM)
    out_tm, h_n, c_n = pl.pallas_call(
        _lstm_mlp_kernel,
        out_shape=(
            jax.ShapeDtypeStruct((T, Bp, LANE), jnp.float32),
            jax.ShapeDtypeStruct((Bp, HIDDEN), jnp.float32),
            jax.ShapeDtypeStruct((Bp, HIDDEN), jnp.float32),
        ),
        in_specs=[vmem] * 8,
        out_specs=(vmem, vmem, vmem),
        scratch_shapes=[
            pltpu.VMEM((T, Bp, LANE), jnp.float32),     # gx: packed gate pre-acts
            pltpu.VMEM((T, Bp, HIDDEN), jnp.float32),   # staged h_t for the head
        ],
    )(x_tm, kparams["wih"], kparams["b"], kparams["whh"],
      kparams["w1"], kparams["b1"], kparams["w2"], kparams["b2"])

    out = jnp.transpose(out_tm[:, :B, :num_outputs], (1, 0, 2))    # (B, T, O)
    hidden = (h_n[None, :B, :], c_n[None, :B, :])                  # (1, B, H) each
    return out, hidden


def _reference_forward(x, params):
    """Pure-JAX f32 reference matching nn.LSTM + fc1/ReLU/fc2 semantics."""
    H = HIDDEN
    B, T, _ = x.shape
    w_ih, w_hh = params["w_ih"], params["w_hh"]
    b = params["b_ih"] + params["b_hh"]
    h = jnp.zeros((B, H), jnp.float32)
    c = jnp.zeros((B, H), jnp.float32)
    hs = []
    for t in range(T):
        gates = x[:, t, :] @ w_ih.T + h @ w_hh.T + b
        i_g = jax.nn.sigmoid(gates[:, 0:H])
        f_g = jax.nn.sigmoid(gates[:, H:2 * H])
        g_g = jnp.tanh(gates[:, 2 * H:3 * H])
        o_g = jax.nn.sigmoid(gates[:, 3 * H:4 * H])
        c = f_g * c + i_g * g_g
        h = o_g * jnp.tanh(c)
        hs.append(h)
    hseq = jnp.stack(hs, axis=1)                                   # (B, T, H)
    z1 = jnp.maximum(hseq @ params["w1"].T + params["b1"], 0.0)
    y = z1 @ params["w2"].T + params["b2"]
    return y, (h[None], c[None])


if __name__ == "__main__":
    num_inputs = 4
    num_outputs = 8
    B, T = 2, 8

    key = jax.random.PRNGKey(0)
    k_param, k_x = jax.random.split(key)
    params = init_params(k_param, num_inputs, num_outputs)
    kparams = prepare_kernel_params(params, num_inputs, num_outputs)
    x = jax.random.normal(k_x, (B, T, num_inputs), jnp.float32)

    out, (h_n, c_n) = lstm_forward(x, kparams, num_outputs=num_outputs)
    jax.block_until_ready((out, h_n, c_n))

    assert out.shape == (B, T, num_outputs)
    assert h_n.shape == (1, B, HIDDEN)
    assert c_n.shape == (1, B, HIDDEN)

    # Tolerance sized for bf16 MXU operands with f32 accumulation (per perf
    # review); elementwise gate math is still f32.
    out_ref, (h_ref, c_ref) = _reference_forward(x, params)
    assert jnp.allclose(out, out_ref, atol=2e-2, rtol=2e-2)
    assert jnp.allclose(h_n, h_ref, atol=2e-2, rtol=2e-2)
    assert jnp.allclose(c_n, c_ref, atol=2e-2, rtol=2e-2)

    print("KERNEL_OK")
</pallas_src>

<mosaic_0001>
module attributes {stable_mosaic.version = 11 : i64} {
  func.func @_lstm_mlp_kernel(%arg0: memref<8x8x8xf32, #tpu.memory_space<vmem>>, %arg1: memref<8x128xf32, #tpu.memory_space<vmem>>, %arg2: memref<1x128xf32, #tpu.memory_space<vmem>>, %arg3: memref<16x128xbf16, #tpu.memory_space<vmem>>, %arg4: memref<16x128xbf16, #tpu.memory_space<vmem>>, %arg5: memref<1x128xf32, #tpu.memory_space<vmem>>, %arg6: memref<128x128xbf16, #tpu.memory_space<vmem>>, %arg7: memref<1x128xf32, #tpu.memory_space<vmem>>, %arg8: memref<8x8x128xf32, #tpu.memory_space<vmem>>, %arg9: memref<8x16xf32, #tpu.memory_space<vmem>>, %arg10: memref<8x16xf32, #tpu.memory_space<vmem>>, %arg11: memref<8x8x128xf32, #tpu.memory_space<vmem>>, %arg12: memref<8x8x16xf32, #tpu.memory_space<vmem>>) attributes {dimension_semantics = [], scalar_prefetch = 0 : i64, scratch_operands = 2 : i64, tpu.core_type = #tpu.core_type<tc>} {
    %c0 = arith.constant 0 : index
    %c0_0 = arith.constant 0 : index
    %c0_1 = arith.constant 0 : index
    %0 = vector.load %arg0[%c0, %c0_0, %c0_1] : memref<8x8x8xf32, #tpu.memory_space<vmem>>, vector<8x8x8xf32>
    %1 = vector.shape_cast %0 : vector<8x8x8xf32> to vector<64x8xf32>
    %c0_2 = arith.constant 0 : index
    %c0_3 = arith.constant 0 : index
    %2 = vector.load %arg1[%c0_2, %c0_3] : memref<8x128xf32, #tpu.memory_space<vmem>>, vector<8x128xf32>
    %cst = arith.constant dense<0.000000e+00> : vector<64x128xf32>
    %3 = tpu.matmul %1, %2, %cst {dimension_numbers = #tpu.dot_dimension_numbers<[1], [0], [0], [1], [0, 0, 1, 1], [], []>} : vector<64x8xf32>, vector<8x128xf32>, vector<64x128xf32> -> vector<64x128xf32>
    %c0_4 = arith.constant 0 : index
    %c0_5 = arith.constant 0 : index
    %4 = vector.load %arg2[%c0_4, %c0_5] : memref<1x128xf32, #tpu.memory_space<vmem>>, vector<1x128xf32>
    %5 = vector.broadcast %4 : vector<1x128xf32> to vector<64x128xf32>
    %6 = arith.addf %3, %5 : vector<64x128xf32>
    %7 = vector.shape_cast %6 : vector<64x128xf32> to vector<8x8x128xf32>
    %c0_6 = arith.constant 0 : index
    %c0_7 = arith.constant 0 : index
    %c0_8 = arith.constant 0 : index
    %8 = vector.load %arg11[%c0_6, %c0_7, %c0_8] : memref<8x8x128xf32, #tpu.memory_space<vmem>>, vector<8x8x128xf32>
    tpu.vector_store %arg11[%c0_6, %c0_7, %c0_8], %7 {strides = array<i32>} : memref<8x8x128xf32, #tpu.memory_space<vmem>>, vector<8x8x128xf32>,
    %c0_9 = arith.constant 0 : index
    %c0_10 = arith.constant 0 : index
    %9 = vector.load %arg3[%c0_9, %c0_10] : memref<16x128xbf16, #tpu.memory_space<vmem>>, vector<16x128xbf16>
    %cst_11 = arith.constant 0.000000e+00 : f32
    %10 = vector.broadcast %cst_11 : f32 to vector<8x16xf32>
    %cst_12 = arith.constant 0.000000e+00 : f32
    %11 = vector.broadcast %cst_12 : f32 to vector<8x16xf32>
    %c0_i32 = arith.constant 0 : i32
    %12 = arith.truncf %10 : vector<8x16xf32> to vector<8x16xbf16>
    %cst_13 = arith.constant dense<0.000000e+00> : vector<8x128xf32>
    %13 = tpu.matmul %12, %9, %cst_13 {dimension_numbers = #tpu.dot_dimension_numbers<[1], [0], [0], [1], [0, 0, 1, 1], [], []>} : vector<8x16xbf16>, vector<16x128xbf16>, vector<8x128xf32> -> vector<8x128xf32>
    %14 = arith.index_cast %c0_i32 : i32 to index
    %c0_14 = arith.constant 0 : index
    %c0_15 = arith.constant 0 : index
    %15 = vector.load %arg11[%14, %c0_14, %c0_15] : memref<8x8x128xf32, #tpu.memory_space<vmem>>, vector<1x8x128xf32>
    %16 = vector.shape_cast %15 : vector<1x8x128xf32> to vector<8x128xf32>
    %17 = arith.addf %13, %16 : vector<8x128xf32>
    %18 = math.tanh %17 : vector<8x128xf32>
    %19 = vector.extract_strided_slice %18 {offsets = [0, 0], sizes = [8, 16], strides = [1, 1]} : vector<8x128xf32> to vector<8x16xf32>
    %cst_16 = arith.constant 5.000000e-01 : f32
    %20 = vector.broadcast %cst_16 : f32 to vector<8x16xf32>
    %21 = arith.mulf %20, %19 : vector<8x16xf32>
    %cst_17 = arith.constant 5.000000e-01 : f32
    %22 = vector.broadcast %cst_17 : f32 to vector<8x16xf32>
    %23 = arith.addf %21, %22 : vector<8x16xf32>
    %24 = vector.extract_strided_slice %18 {offsets = [0, 16], sizes = [8, 16], strides = [1, 1]} : vector<8x128xf32> to vector<8x16xf32>
    %cst_18 = arith.constant 5.000000e-01 : f32
    %25 = vector.broadcast %cst_18 : f32 to vector<8x16xf32>
    %26 = arith.mulf %25, %24 : vector<8x16xf32>
    %cst_19 = arith.constant 5.000000e-01 : f32
    %27 = vector.broadcast %cst_19 : f32 to vector<8x16xf32>
    %28 = arith.addf %26, %27 : vector<8x16xf32>
    %29 = vector.extract_strided_slice %18 {offsets = [0, 32], sizes = [8, 16], strides = [1, 1]} : vector<8x128xf32> to vector<8x16xf32>
    %30 = vector.extract_strided_slice %18 {offsets = [0, 48], sizes = [8, 16], strides = [1, 1]} : vector<8x128xf32> to vector<8x16xf32>
    %cst_20 = arith.constant 5.000000e-01 : f32
    %31 = vector.broadcast %cst_20 : f32 to vector<8x16xf32>
    %32 = arith.mulf %31, %30 : vector<8x16xf32>
    %cst_21 = arith.constant 5.000000e-01 : f32
    %33 = vector.broadcast %cst_21 : f32 to vector<8x16xf32>
    %34 = arith.addf %32, %33 : vector<8x16xf32>
    %35 = arith.mulf %28, %11 : vector<8x16xf32>
    %36 = arith.mulf %23, %29 : vector<8x16xf32>
    %37 = arith.addf %35, %36 : vector<8x16xf32>
    %38 = math.tanh %37 : vector<8x16xf32>
    %39 = arith.mulf %34, %38 : vector<8x16xf32>
    %40 = arith.index_cast %c0_i32 : i32 to index
    %c0_22 = arith.constant 0 : index
    %c0_23 = arith.constant 0 : index
    %41 = vector.load %arg12[%40, %c0_22, %c0_23] : memref<8x8x16xf32, #tpu.memory_space<vmem>>, vector<1x8x16xf32>
    %42 = vector.shape_cast %41 : vector<1x8x16xf32> to vector<8x16xf32>
    %43 = vector.shape_cast %39 : vector<8x16xf32> to vector<1x8x16xf32>
    tpu.vector_store %arg12[%40, %c0_22, %c0_23], %43 {strides = array<i32>} : memref<8x8x16xf32, #tpu.memory_space<vmem>>, vector<1x8x16xf32>,
    %c1_i32 = arith.constant 1 : i32
    %44 = arith.truncf %39 : vector<8x16xf32> to vector<8x16xbf16>
    %cst_24 = arith.constant dense<0.000000e+00> : vector<8x128xf32>
    %45 = tpu.matmul %44, %9, %cst_24 {dimension_numbers = #tpu.dot_dimension_numbers<[1], [0], [0], [1], [0, 0, 1, 1], [], []>} : vector<8x16xbf16>, vector<16x128xbf16>, vector<8x128xf32> -> vector<8x128xf32>
    %46 = arith.index_cast %c1_i32 : i32 to index
    %c0_25 = arith.constant 0 : index
    %c0_26 = arith.constant 0 : index
    %47 = vector.load %arg11[%46, %c0_25, %c0_26] : memref<8x8x128xf32, #tpu.memory_space<vmem>>, vector<1x8x128xf32>
    %48 = vector.shape_cast %47 : vector<1x8x128xf32> to vector<8x128xf32>
    %49 = arith.addf %45, %48 : vector<8x128xf32>
    %50 = math.tanh %49 : vector<8x128xf32>
    %51 = vector.extract_strided_slice %50 {offsets = [0, 0], sizes = [8, 16], strides = [1, 1]} : vector<8x128xf32> to vector<8x16xf32>
    %cst_27 = arith.constant 5.000000e-01 : f32
    %52 = vector.broadcast %cst_27 : f32 to vector<8x16xf32>
    %53 = arith.mulf %52, %51 : vector<8x16xf32>
    %cst_28 = arith.constant 5.000000e-01 : f32
    %54 = vector.broadcast %cst_28 : f32 to vector<8x16xf32>
    %55 = arith.addf %53, %54 : vector<8x16xf32>
    %56 = vector.extract_strided_slice %50 {offsets = [0, 16], sizes = [8, 16], strides = [1, 1]} : vector<8x128xf32> to vector<8x16xf32>
    %cst_29 = arith.constant 5.000000e-01 : f32
    %57 = vector.broadcast %cst_29 : f32 to vector<8x16xf32>
    %58 = arith.mulf %57, %56 : vector<8x16xf32>
    %cst_30 = arith.constant 5.000000e-01 : f32
    %59 = vector.broadcast %cst_30 : f32 to vector<8x16xf32>
    %60 = arith.addf %58, %59 : vector<8x16xf32>
    %61 = vector.extract_strided_slice %50 {offsets = [0, 32], sizes = [8, 16], strides = [1, 1]} : vector<8x128xf32> to vector<8x16xf32>
    %62 = vector.extract_strided_slice %50 {offsets = [0, 48], sizes = [8, 16], strides = [1, 1]} : vector<8x128xf32> to vector<8x16xf32>
    %cst_31 = arith.constant 5.000000e-01 : f32
    %63 = vector.broadcast %cst_31 : f32 to vector<8x16xf32>
    %64 = arith.mulf %63, %62 : vector<8x16xf32>
    %cst_32 = arith.constant 5.000000e-01 : f32
    %65 = vector.broadcast %cst_32 : f32 to vector<8x16xf32>
    %66 = arith.addf %64, %65 : vector<8x16xf32>
    %67 = arith.mulf %60, %37 : vector<8x16xf32>
    %68 = arith.mulf %55, %61 : vector<8x16xf32>
    %69 = arith.addf %67, %68 : vector<8x16xf32>
    %70 = math.tanh %69 : vector<8x16xf32>
    %71 = arith.mulf %66, %70 : vector<8x16xf32>
    %72 = arith.index_cast %c1_i32 : i32 to index
    %c0_33 = arith.constant 0 : index
    %c0_34 = arith.constant 0 : index
    %73 = vector.load %arg12[%72, %c0_33, %c0_34] : memref<8x8x16xf32, #tpu.memory_space<vmem>>, vector<1x8x16xf32>
    %74 = vector.shape_cast %73 : vector<1x8x16xf32> to vector<8x16xf32>
    %75 = vector.shape_cast %71 : vector<8x16xf32> to vector<1x8x16xf32>
    tpu.vector_store %arg12[%72, %c0_33, %c0_34], %75 {strides = array<i32>} : memref<8x8x16xf32, #tpu.memory_space<vmem>>, vector<1x8x16xf32>,
    %c2_i32 = arith.constant 2 : i32
    %76 = arith.truncf %71 : vector<8x16xf32> to vector<8x16xbf16>
    %cst_35 = arith.constant dense<0.000000e+00> : vector<8x128xf32>
    %77 = tpu.matmul %76, %9, %cst_35 {dimension_numbers = #tpu.dot_dimension_numbers<[1], [0], [0], [1], [0, 0, 1, 1], [], []>} : vector<8x16xbf16>, vector<16x128xbf16>, vector<8x128xf32> -> vector<8x128xf32>
    %78 = arith.index_cast %c2_i32 : i32 to index
    %c0_36 = arith.constant 0 : index
    %c0_37 = arith.constant 0 : index
    %79 = vector.load %arg11[%78, %c0_36, %c0_37] : memref<8x8x128xf32, #tpu.memory_space<vmem>>, vector<1x8x128xf32>
    %80 = vector.shape_cast %79 : vector<1x8x128xf32> to vector<8x128xf32>
    %81 = arith.addf %77, %80 : vector<8x128xf32>
    %82 = math.tanh %81 : vector<8x128xf32>
    %83 = vector.extract_strided_slice %82 {offsets = [0, 0], sizes = [8, 16], strides = [1, 1]} : vector<8x128xf32> to vector<8x16xf32>
    %cst_38 = arith.constant 5.000000e-01 : f32
    %84 = vector.broadcast %cst_38 : f32 to vector<8x16xf32>
    %85 = arith.mulf %84, %83 : vector<8x16xf32>
    %cst_39 = arith.constant 5.000000e-01 : f32
    %86 = vector.broadcast %cst_39 : f32 to vector<8x16xf32>
    %87 = arith.addf %85, %86 : vector<8x16xf32>
    %88 = vector.extract_strided_slice %82 {offsets = [0, 16], sizes = [8, 16], strides = [1, 1]} : vector<8x128xf32> to vector<8x16xf32>
    %cst_40 = arith.constant 5.000000e-01 : f32
    %89 = vector.broadcast %cst_40 : f32 to vector<8x16xf32>
    %90 = arith.mulf %89, %88 : vector<8x16xf32>
    %cst_41 = arith.constant 5.000000e-01 : f32
    %91 = vector.broadcast %cst_41 : f32 to vector<8x16xf32>
    %92 = arith.addf %90, %91 : vector<8x16xf32>
    %93 = vector.extract_strided_slice %82 {offsets = [0, 32], sizes = [8, 16], strides = [1, 1]} : vector<8x128xf32> to vector<8x16xf32>
    %94 = vector.extract_strided_slice %82 {offsets = [0, 48], sizes = [8, 16], strides = [1, 1]} : vector<8x128xf32> to vector<8x16xf32>
    %cst_42 = arith.constant 5.000000e-01 : f32
    %95 = vector.broadcast %cst_42 : f32 to vector<8x16xf32>
    %96 = arith.mulf %95, %94 : vector<8x16xf32>
    %cst_43 = arith.constant 5.000000e-01 : f32
    %97 = vector.broadcast %cst_43 : f32 to vector<8x16xf32>
    %98 = arith.addf %96, %97 : vector<8x16xf32>
    %99 = arith.mulf %92, %69 : vector<8x16xf32>
    %100 = arith.mulf %87, %93 : vector<8x16xf32>
    %101 = arith.addf %99, %100 : vector<8x16xf32>
    %102 = math.tanh %101 : vector<8x16xf32>
    %103 = arith.mulf %98, %102 : vector<8x16xf32>
    %104 = arith.index_cast %c2_i32 : i32 to index
    %c0_44 = arith.constant 0 : index
    %c0_45 = arith.constant 0 : index
    %105 = vector.load %arg12[%104, %c0_44, %c0_45] : memref<8x8x16xf32, #tpu.memory_space<vmem>>, vector<1x8x16xf32>
    %106 = vector.shape_cast %105 : vector<1x8x16xf32> to vector<8x16xf32>
    %107 = vector.shape_cast %103 : vector<8x16xf32> to vector<1x8x16xf32>
    tpu.vector_store %arg12[%104, %c0_44, %c0_45], %107 {strides = array<i32>} : memref<8x8x16xf32, #tpu.memory_space<vmem>>, vector<1x8x16xf32>,
    %c3_i32 = arith.constant 3 : i32
    %108 = arith.truncf %103 : vector<8x16xf32> to vector<8x16xbf16>
    %cst_46 = arith.constant dense<0.000000e+00> : vector<8x128xf32>
    %109 = tpu.matmul %108, %9, %cst_46 {dimension_numbers = #tpu.dot_dimension_numbers<[1], [0], [0], [1], [0, 0, 1, 1], [], []>} : vector<8x16xbf16>, vector<16x128xbf16>, vector<8x128xf32> -> vector<8x128xf32>
    %110 = arith.index_cast %c3_i32 : i32 to index
    %c0_47 = arith.constant 0 : index
    %c0_48 = arith.constant 0 : index
    %111 = vector.load %arg11[%110, %c0_47, %c0_48] : memref<8x8x128xf32, #tpu.memory_space<vmem>>, vector<1x8x128xf32>
    %112 = vector.shape_cast %111 : vector<1x8x128xf32> to vector<8x128xf32>
    %113 = arith.addf %109, %112 : vector<8x128xf32>
    %114 = math.tanh %113 : vector<8x128xf32>
    %115 = vector.extract_strided_slice %114 {offsets = [0, 0], sizes = [8, 16], strides = [1, 1]} : vector<8x128xf32> to vector<8x16xf32>
    %cst_49 = arith.constant 5.000000e-01 : f32
    %116 = vector.broadcast %cst_49 : f32 to vector<8x16xf32>
    %117 = arith.mulf %116, %115 : vector<8x16xf32>
    %cst_50 = arith.constant 5.000000e-01 : f32
    %118 = vector.broadcast %cst_50 : f32 to vector<8x16xf32>
    %119 = arith.addf %117, %118 : vector<8x16xf32>
    %120 = vector.extract_strided_slice %114 {offsets = [0, 16], sizes = [8, 16], strides = [1, 1]} : vector<8x128xf32> to vector<8x16xf32>
    %cst_51 = arith.constant 5.000000e-01 : f32
    %121 = vector.broadcast %cst_51 : f32 to vector<8x16xf32>
    %122 = arith.mulf %121, %120 : vector<8x16xf32>
    %cst_52 = arith.constant 5.000000e-01 : f32
    %123 = vector.broadcast %cst_52 : f32 to vector<8x16xf32>
    %124 = arith.addf %122, %123 : vector<8x16xf32>
    %125 = vector.extract_strided_slice %114 {offsets = [0, 32], sizes = [8, 16], strides = [1, 1]} : vector<8x128xf32> to vector<8x16xf32>
    %126 = vector.extract_strided_slice %114 {offsets = [0, 48], sizes = [8, 16], strides = [1, 1]} : vector<8x128xf32> to vector<8x16xf32>
    %cst_53 = arith.constant 5.000000e-01 : f32
    %127 = vector.broadcast %cst_53 : f32 to vector<8x16xf32>
    %128 = arith.mulf %127, %126 : vector<8x16xf32>
    %cst_54 = arith.constant 5.000000e-01 : f32
    %129 = vector.broadcast %cst_54 : f32 to vector<8x16xf32>
    %130 = arith.addf %128, %129 : vector<8x16xf32>
    %131 = arith.mulf %124, %101 : vector<8x16xf32>
    %132 = arith.mulf %119, %125 : vector<8x16xf32>
    %133 = arith.addf %131, %132 : vector<8x16xf32>
    %134 = math.tanh %133 : vector<8x16xf32>
    %135 = arith.mulf %130, %134 : vector<8x16xf32>
    %136 = arith.index_cast %c3_i32 : i32 to index
    %c0_55 = arith.constant 0 : index
    %c0_56 = arith.constant 0 : index
    %137 = vector.load %arg12[%136, %c0_55, %c0_56] : memref<8x8x16xf32, #tpu.memory_space<vmem>>, vector<1x8x16xf32>
    %138 = vector.shape_cast %137 : vector<1x8x16xf32> to vector<8x16xf32>
    %139 = vector.shape_cast %135 : vector<8x16xf32> to vector<1x8x16xf32>
    tpu.vector_store %arg12[%136, %c0_55, %c0_56], %139 {strides = array<i32>} : memref<8x8x16xf32, #tpu.memory_space<vmem>>, vector<1x8x16xf32>,
    %c4_i32 = arith.constant 4 : i32
    %140 = arith.truncf %135 : vector<8x16xf32> to vector<8x16xbf16>
    %cst_57 = arith.constant dense<0.000000e+00> : vector<8x128xf32>
    %141 = tpu.matmul %140, %9, %cst_57 {dimension_numbers = #tpu.dot_dimension_numbers<[1], [0], [0], [1], [0, 0, 1, 1], [], []>} : vector<8x16xbf16>, vector<16x128xbf16>, vector<8x128xf32> -> vector<8x128xf32>
    %142 = arith.index_cast %c4_i32 : i32 to index
    %c0_58 = arith.constant 0 : index
    %c0_59 = arith.constant 0 : index
    %143 = vector.load %arg11[%142, %c0_58, %c0_59] : memref<8x8x128xf32, #tpu.memory_space<vmem>>, vector<1x8x128xf32>
    %144 = vector.shape_cast %143 : vector<1x8x128xf32> to vector<8x128xf32>
    %145 = arith.addf %141, %144 : vector<8x128xf32>
    %146 = math.tanh %145 : vector<8x128xf32>
    %147 = vector.extract_strided_slice %146 {offsets = [0, 0], sizes = [8, 16], strides = [1, 1]} : vector<8x128xf32> to vector<8x16xf32>
    %cst_60 = arith.constant 5.000000e-01 : f32
    %148 = vector.broadcast %cst_60 : f32 to vector<8x16xf32>
    %149 = arith.mulf %148, %147 : vector<8x16xf32>
    %cst_61 = arith.constant 5.000000e-01 : f32
    %150 = vector.broadcast %cst_61 : f32 to vector<8x16xf32>
    %151 = arith.addf %149, %150 : vector<8x16xf32>
    %152 = vector.extract_strided_slice %146 {offsets = [0, 16], sizes = [8, 16], strides = [1, 1]} : vector<8x128xf32> to vector<8x16xf32>
    %cst_62 = arith.constant 5.000000e-01 : f32
    %153 = vector.broadcast %cst_62 : f32 to vector<8x16xf32>
    %154 = arith.mulf %153, %152 : vector<8x16xf32>
    %cst_63 = arith.constant 5.000000e-01 : f32
    %155 = vector.broadcast %cst_63 : f32 to vector<8x16xf32>
    %156 = arith.addf %154, %155 : vector<8x16xf32>
    %157 = vector.extract_strided_slice %146 {offsets = [0, 32], sizes = [8, 16], strides = [1, 1]} : vector<8x128xf32> to vector<8x16xf32>
    %158 = vector.extract_strided_slice %146 {offsets = [0, 48], sizes = [8, 16], strides = [1, 1]} : vector<8x128xf32> to vector<8x16xf32>
    %cst_64 = arith.constant 5.000000e-01 : f32
    %159 = vector.broadcast %cst_64 : f32 to vector<8x16xf32>
    %160 = arith.mulf %159, %158 : vector<8x16xf32>
    %cst_65 = arith.constant 5.000000e-01 : f32
    %161 = vector.broadcast %cst_65 : f32 to vector<8x16xf32>
    %162 = arith.addf %160, %161 : vector<8x16xf32>
    %163 = arith.mulf %156, %133 : vector<8x16xf32>
    %164 = arith.mulf %151, %157 : vector<8x16xf32>
    %165 = arith.addf %163, %164 : vector<8x16xf32>
    %166 = math.tanh %165 : vector<8x16xf32>
    %167 = arith.mulf %162, %166 : vector<8x16xf32>
    %168 = arith.index_cast %c4_i32 : i32 to index
    %c0_66 = arith.constant 0 : index
    %c0_67 = arith.constant 0 : index
    %169 = vector.load %arg12[%168, %c0_66, %c0_67] : memref<8x8x16xf32, #tpu.memory_space<vmem>>, vector<1x8x16xf32>
    %170 = vector.shape_cast %169 : vector<1x8x16xf32> to vector<8x16xf32>
    %171 = vector.shape_cast %167 : vector<8x16xf32> to vector<1x8x16xf32>
    tpu.vector_store %arg12[%168, %c0_66, %c0_67], %171 {strides = array<i32>} : memref<8x8x16xf32, #tpu.memory_space<vmem>>, vector<1x8x16xf32>,
    %c5_i32 = arith.constant 5 : i32
    %172 = arith.truncf %167 : vector<8x16xf32> to vector<8x16xbf16>
    %cst_68 = arith.constant dense<0.000000e+00> : vector<8x128xf32>
    %173 = tpu.matmul %172, %9, %cst_68 {dimension_numbers = #tpu.dot_dimension_numbers<[1], [0], [0], [1], [0, 0, 1, 1], [], []>} : vector<8x16xbf16>, vector<16x128xbf16>, vector<8x128xf32> -> vector<8x128xf32>
    %174 = arith.index_cast %c5_i32 : i32 to index
    %c0_69 = arith.constant 0 : index
    %c0_70 = arith.constant 0 : index
    %175 = vector.load %arg11[%174, %c0_69, %c0_70] : memref<8x8x128xf32, #tpu.memory_space<vmem>>, vector<1x8x128xf32>
    %176 = vector.shape_cast %175 : vector<1x8x128xf32> to vector<8x128xf32>
    %177 = arith.addf %173, %176 : vector<8x128xf32>
    %178 = math.tanh %177 : vector<8x128xf32>
    %179 = vector.extract_strided_slice %178 {offsets = [0, 0], sizes = [8, 16], strides = [1, 1]} : vector<8x128xf32> to vector<8x16xf32>
    %cst_71 = arith.constant 5.000000e-01 : f32
    %180 = vector.broadcast %cst_71 : f32 to vector<8x16xf32>
    %181 = arith.mulf %180, %179 : vector<8x16xf32>
    %cst_72 = arith.constant 5.000000e-01 : f32
    %182 = vector.broadcast %cst_72 : f32 to vector<8x16xf32>
    %183 = arith.addf %181, %182 : vector<8x16xf32>
    %184 = vector.extract_strided_slice %178 {offsets = [0, 16], sizes = [8, 16], strides = [1, 1]} : vector<8x128xf32> to vector<8x16xf32>
    %cst_73 = arith.constant 5.000000e-01 : f32
    %185 = vector.broadcast %cst_73 : f32 to vector<8x16xf32>
    %186 = arith.mulf %185, %184 : vector<8x16xf32>
    %cst_74 = arith.constant 5.000000e-01 : f32
    %187 = vector.broadcast %cst_74 : f32 to vector<8x16xf32>
    %188 = arith.addf %186, %187 : vector<8x16xf32>
    %189 = vector.extract_strided_slice %178 {offsets = [0, 32], sizes = [8, 16], strides = [1, 1]} : vector<8x128xf32> to vector<8x16xf32>
    %190 = vector.extract_strided_slice %178 {offsets = [0, 48], sizes = [8, 16], strides = [1, 1]} : vector<8x128xf32> to vector<8x16xf32>
    %cst_75 = arith.constant 5.000000e-01 : f32
    %191 = vector.broadcast %cst_75 : f32 to vector<8x16xf32>
    %192 = arith.mulf %191, %190 : vector<8x16xf32>
    %cst_76 = arith.constant 5.000000e-01 : f32
    %193 = vector.broadcast %cst_76 : f32 to vector<8x16xf32>
    %194 = arith.addf %192, %193 : vector<8x16xf32>
    %195 = arith.mulf %188, %165 : vector<8x16xf32>
    %196 = arith.mulf %183, %189 : vector<8x16xf32>
    %197 = arith.addf %195, %196 : vector<8x16xf32>
    %198 = math.tanh %197 : vector<8x16xf32>
    %199 = arith.mulf %194, %198 : vector<8x16xf32>
    %200 = arith.index_cast %c5_i32 : i32 to index
    %c0_77 = arith.constant 0 : index
    %c0_78 = arith.constant 0 : index
    %201 = vector.load %arg12[%200, %c0_77, %c0_78] : memref<8x8x16xf32, #tpu.memory_space<vmem>>, vector<1x8x16xf32>
    %202 = vector.shape_cast %201 : vector<1x8x16xf32> to vector<8x16xf32>
    %203 = vector.shape_cast %199 : vector<8x16xf32> to vector<1x8x16xf32>
    tpu.vector_store %arg12[%200, %c0_77, %c0_78], %203 {strides = array<i32>} : memref<8x8x16xf32, #tpu.memory_space<vmem>>, vector<1x8x16xf32>,
    %c6_i32 = arith.constant 6 : i32
    %204 = arith.truncf %199 : vector<8x16xf32> to vector<8x16xbf16>
    %cst_79 = arith.constant dense<0.000000e+00> : vector<8x128xf32>
    %205 = tpu.matmul %204, %9, %cst_79 {dimension_numbers = #tpu.dot_dimension_numbers<[1], [0], [0], [1], [0, 0, 1, 1], [], []>} : vector<8x16xbf16>, vector<16x128xbf16>, vector<8x128xf32> -> vector<8x128xf32>
    %206 = arith.index_cast %c6_i32 : i32 to index
    %c0_80 = arith.constant 0 : index
    %c0_81 = arith.constant 0 : index
    %207 = vector.load %arg11[%206, %c0_80, %c0_81] : memref<8x8x128xf32, #tpu.memory_space<vmem>>, vector<1x8x128xf32>
    %208 = vector.shape_cast %207 : vector<1x8x128xf32> to vector<8x128xf32>
    %209 = arith.addf %205, %208 : vector<8x128xf32>
    %210 = math.tanh %209 : vector<8x128xf32>
    %211 = vector.extract_strided_slice %210 {offsets = [0, 0], sizes = [8, 16], strides = [1, 1]} : vector<8x128xf32> to vector<8x16xf32>
    %cst_82 = arith.constant 5.000000e-01 : f32
    %212 = vector.broadcast %cst_82 : f32 to vector<8x16xf32>
    %213 = arith.mulf %212, %211 : vector<8x16xf32>
    %cst_83 = arith.constant 5.000000e-01 : f32
    %214 = vector.broadcast %cst_83 : f32 to vector<8x16xf32>
    %215 = arith.addf %213, %214 : vector<8x16xf32>
    %216 = vector.extract_strided_slice %210 {offsets = [0, 16], sizes = [8, 16], strides = [1, 1]} : vector<8x128xf32> to vector<8x16xf32>
    %cst_84 = arith.constant 5.000000e-01 : f32
    %217 = vector.broadcast %cst_84 : f32 to vector<8x16xf32>
    %218 = arith.mulf %217, %216 : vector<8x16xf32>
    %cst_85 = arith.constant 5.000000e-01 : f32
    %219 = vector.broadcast %cst_85 : f32 to vector<8x16xf32>
    %220 = arith.addf %218, %219 : vector<8x16xf32>
    %221 = vector.extract_strided_slice %210 {offsets = [0, 32], sizes = [8, 16], strides = [1, 1]} : vector<8x128xf32> to vector<8x16xf32>
    %222 = vector.extract_strided_slice %210 {offsets = [0, 48], sizes = [8, 16], strides = [1, 1]} : vector<8x128xf32> to vector<8x16xf32>
    %cst_86 = arith.constant 5.000000e-01 : f32
    %223 = vector.broadcast %cst_86 : f32 to vector<8x16xf32>
    %224 = arith.mulf %223, %222 : vector<8x16xf32>
    %cst_87 = arith.constant 5.000000e-01 : f32
    %225 = vector.broadcast %cst_87 : f32 to vector<8x16xf32>
    %226 = arith.addf %224, %225 : vector<8x16xf32>
    %227 = arith.mulf %220, %197 : vector<8x16xf32>
    %228 = arith.mulf %215, %221 : vector<8x16xf32>
    %229 = arith.addf %227, %228 : vector<8x16xf32>
    %230 = math.tanh %229 : vector<8x16xf32>
    %231 = arith.mulf %226, %230 : vector<8x16xf32>
    %232 = arith.index_cast %c6_i32 : i32 to index
    %c0_88 = arith.constant 0 : index
    %c0_89 = arith.constant 0 : index
    %233 = vector.load %arg12[%232, %c0_88, %c0_89] : memref<8x8x16xf32, #tpu.memory_space<vmem>>, vector<1x8x16xf32>
    %234 = vector.shape_cast %233 : vector<1x8x16xf32> to vector<8x16xf32>
    %235 = vector.shape_cast %231 : vector<8x16xf32> to vector<1x8x16xf32>
    tpu.vector_store %arg12[%232, %c0_88, %c0_89], %235 {strides = array<i32>} : memref<8x8x16xf32, #tpu.memory_space<vmem>>, vector<1x8x16xf32>,
    %c7_i32 = arith.constant 7 : i32
    %236 = arith.truncf %231 : vector<8x16xf32> to vector<8x16xbf16>
    %cst_90 = arith.constant dense<0.000000e+00> : vector<8x128xf32>
    %237 = tpu.matmul %236, %9, %cst_90 {dimension_numbers = #tpu.dot_dimension_numbers<[1], [0], [0], [1], [0, 0, 1, 1], [], []>} : vector<8x16xbf16>, vector<16x128xbf16>, vector<8x128xf32> -> vector<8x128xf32>
    %238 = arith.index_cast %c7_i32 : i32 to index
    %c0_91 = arith.constant 0 : index
    %c0_92 = arith.constant 0 : index
    %239 = vector.load %arg11[%238, %c0_91, %c0_92] : memref<8x8x128xf32, #tpu.memory_space<vmem>>, vector<1x8x128xf32>
    %240 = vector.shape_cast %239 : vector<1x8x128xf32> to vector<8x128xf32>
    %241 = arith.addf %237, %240 : vector<8x128xf32>
    %242 = math.tanh %241 : vector<8x128xf32>
    %243 = vector.extract_strided_slice %242 {offsets = [0, 0], sizes = [8, 16], strides = [1, 1]} : vector<8x128xf32> to vector<8x16xf32>
    %cst_93 = arith.constant 5.000000e-01 : f32
    %244 = vector.broadcast %cst_93 : f32 to vector<8x16xf32>
    %245 = arith.mulf %244, %243 : vector<8x16xf32>
    %cst_94 = arith.constant 5.000000e-01 : f32
    %246 = vector.broadcast %cst_94 : f32 to vector<8x16xf32>
    %247 = arith.addf %245, %246 : vector<8x16xf32>
    %248 = vector.extract_strided_slice %242 {offsets = [0, 16], sizes = [8, 16], strides = [1, 1]} : vector<8x128xf32> to vector<8x16xf32>
    %cst_95 = arith.constant 5.000000e-01 : f32
    %249 = vector.broadcast %cst_95 : f32 to vector<8x16xf32>
    %250 = arith.mulf %249, %248 : vector<8x16xf32>
    %cst_96 = arith.constant 5.000000e-01 : f32
    %251 = vector.broadcast %cst_96 : f32 to vector<8x16xf32>
    %252 = arith.addf %250, %251 : vector<8x16xf32>
    %253 = vector.extract_strided_slice %242 {offsets = [0, 32], sizes = [8, 16], strides = [1, 1]} : vector<8x128xf32> to vector<8x16xf32>
    %254 = vector.extract_strided_slice %242 {offsets = [0, 48], sizes = [8, 16], strides = [1, 1]} : vector<8x128xf32> to vector<8x16xf32>
    %cst_97 = arith.constant 5.000000e-01 : f32
    %255 = vector.broadcast %cst_97 : f32 to vector<8x16xf32>
    %256 = arith.mulf %255, %254 : vector<8x16xf32>
    %cst_98 = arith.constant 5.000000e-01 : f32
    %257 = vector.broadcast %cst_98 : f32 to vector<8x16xf32>
    %258 = arith.addf %256, %257 : vector<8x16xf32>
    %259 = arith.mulf %252, %229 : vector<8x16xf32>
    %260 = arith.mulf %247, %253 : vector<8x16xf32>
    %261 = arith.addf %259, %260 : vector<8x16xf32>
    %262 = math.tanh %261 : vector<8x16xf32>
    %263 = arith.mulf %258, %262 : vector<8x16xf32>
    %264 = arith.index_cast %c7_i32 : i32 to index
    %c0_99 = arith.constant 0 : index
    %c0_100 = arith.constant 0 : index
    %265 = vector.load %arg12[%264, %c0_99, %c0_100] : memref<8x8x16xf32, #tpu.memory_space<vmem>>, vector<1x8x16xf32>
    %266 = vector.shape_cast %265 : vector<1x8x16xf32> to vector<8x16xf32>
    %267 = vector.shape_cast %263 : vector<8x16xf32> to vector<1x8x16xf32>
    tpu.vector_store %arg12[%264, %c0_99, %c0_100], %267 {strides = array<i32>} : memref<8x8x16xf32, #tpu.memory_space<vmem>>, vector<1x8x16xf32>,
    %c8_i32 = arith.constant 8 : i32
    %c0_101 = arith.constant 0 : index
    %c0_102 = arith.constant 0 : index
    %268 = vector.load %arg9[%c0_101, %c0_102] : memref<8x16xf32, #tpu.memory_space<vmem>>, vector<8x16xf32>
    tpu.vector_store %arg9[%c0_101, %c0_102], %263 {strides = array<i32>} : memref<8x16xf32, #tpu.memory_space<vmem>>, vector<8x16xf32>,
    %c0_103 = arith.constant 0 : index
    %c0_104 = arith.constant 0 : index
    %269 = vector.load %arg10[%c0_103, %c0_104] : memref<8x16xf32, #tpu.memory_space<vmem>>, vector<8x16xf32>
    tpu.vector_store %arg10[%c0_103, %c0_104], %261 {strides = array<i32>} : memref<8x16xf32, #tpu.memory_space<vmem>>, vector<8x16xf32>,
    %c0_105 = arith.constant 0 : index
    %c0_106 = arith.constant 0 : index
    %c0_107 = arith.constant 0 : index
    %270 = vector.load %arg12[%c0_105, %c0_106, %c0_107] : memref<8x8x16xf32, #tpu.memory_space<vmem>>, vector<8x8x16xf32>
    %271 = vector.shape_cast %270 : vector<8x8x16xf32> to vector<64x16xf32>
    %272 = arith.truncf %271 : vector<64x16xf32> to vector<64x16xbf16>
    %c0_108 = arith.constant 0 : index
    %c0_109 = arith.constant 0 : index
    %273 = vector.load %arg4[%c0_108, %c0_109] : memref<16x128xbf16, #tpu.memory_space<vmem>>, vector<16x128xbf16>
    %cst_110 = arith.constant dense<0.000000e+00> : vector<64x128xf32>
    %274 = tpu.matmul %272, %273, %cst_110 {dimension_numbers = #tpu.dot_dimension_numbers<[1], [0], [0], [1], [0, 0, 1, 1], [], []>} : vector<64x16xbf16>, vector<16x128xbf16>, vector<64x128xf32> -> vector<64x128xf32>
    %c0_111 = arith.constant 0 : index
    %c0_112 = arith.constant 0 : index
    %275 = vector.load %arg5[%c0_111, %c0_112] : memref<1x128xf32, #tpu.memory_space<vmem>>, vector<1x128xf32>
    %276 = vector.broadcast %275 : vector<1x128xf32> to vector<64x128xf32>
    %277 = arith.addf %274, %276 : vector<64x128xf32>
    %cst_113 = arith.constant 0.000000e+00 : f32
    %278 = vector.broadcast %cst_113 : f32 to vector<64x128xf32>
    %279 = arith.maximumf %277, %278 : vector<64x128xf32>
    %280 = arith.truncf %279 : vector<64x128xf32> to vector<64x128xbf16>
    %c0_114 = arith.constant 0 : index
    %c0_115 = arith.constant 0 : index
    %281 = vector.load %arg6[%c0_114, %c0_115] : memref<128x128xbf16, #tpu.memory_space<vmem>>, vector<128x128xbf16>
    %cst_116 = arith.constant dense<0.000000e+00> : vector<64x128xf32>
    %282 = tpu.matmul %280, %281, %cst_116 {dimension_numbers = #tpu.dot_dimension_numbers<[1], [0], [0], [1], [0, 0, 1, 1], [], []>} : vector<64x128xbf16>, vector<128x128xbf16>, vector<64x128xf32> -> vector<64x128xf32>
    %c0_117 = arith.constant 0 : index
    %c0_118 = arith.constant 0 : index
    %283 = vector.load %arg7[%c0_117, %c0_118] : memref<1x128xf32, #tpu.memory_space<vmem>>, vector<1x128xf32>
    %284 = vector.broadcast %283 : vector<1x128xf32> to vector<64x128xf32>
    %285 = arith.addf %282, %284 : vector<64x128xf32>
    %286 = vector.shape_cast %285 : vector<64x128xf32> to vector<8x8x128xf32>
    %c0_119 = arith.constant 0 : index
    %c0_120 = arith.constant 0 : index
    %c0_121 = arith.constant 0 : index
    %287 = vector.load %arg8[%c0_119, %c0_120, %c0_121] : memref<8x8x128xf32, #tpu.memory_space<vmem>>, vector<8x8x128xf32>
    tpu.vector_store %arg8[%c0_119, %c0_120, %c0_121], %286 {strides = array<i32>} : memref<8x8x128xf32, #tpu.memory_space<vmem>>, vector<8x8x128xf32>,
    return
  }
}

</mosaic_0001>

<llo_original>
// kernel: lstm_forward.1
$region0: #{lstm_forward.1}
  #allocation0 [shape = 'u32[]', space=smem, size = 0x4, offset = 0x4, fixed_abs, tag = 'smem constant byte address 0x4 - core index']
  #allocation1 [shape = 'u32[144,128]{1,0:T(1,128)}', space=vmem, size = 0x12000, scoped, tag = 'internal scratch']
  #allocation2 [shape = 'f32[8,8,128]{2,1,0:T(8,128)}', space=vmem, size = 0x8000, scoped, tag = 'scratch operand']
  #allocation3 [shape = 'f32[8,8,16]{2,1,0:T(8,128)}', space=vmem, size = 0x8000, scoped, tag = 'scratch operand']
  %s0 = inlined_call_operand.vmem [shape: f32[8,8,8], index: 0, kind: input, shape index: {}]
  %s1 = inlined_call_operand.vmem [shape: f32[8,128], index: 1, kind: input, shape index: {}]
  %s2 = inlined_call_operand.vmem [shape: f32[1,128], index: 2, kind: input, shape index: {}]
  %s3 = inlined_call_operand.vmem [shape: bf16[16,128], index: 3, kind: input, shape index: {}]
  %s4 = inlined_call_operand.vmem [shape: bf16[16,128], index: 4, kind: input, shape index: {}]
  %s5 = inlined_call_operand.vmem [shape: f32[1,128], index: 5, kind: input, shape index: {}]
  %s6 = inlined_call_operand.vmem [shape: bf16[128,128], index: 6, kind: input, shape index: {}]
  %s7 = inlined_call_operand.vmem [shape: f32[1,128], index: 7, kind: input, shape index: {}]
  %s8 = inlined_call_operand.vmem [shape: f32[8,8,128], index: 8, kind: output, shape index: {0}]
  %s9 = inlined_call_operand.vmem [shape: f32[8,16], index: 9, kind: output, shape index: {1}]
  %s10 = inlined_call_operand.vmem [shape: f32[8,16], index: 10, kind: output, shape index: {2}]
  %11 = xla_tuple %s8, %s9, %s10
  %s12 = sld [smem:[#allocation0]]
  $region58: #{lstm_forward.1} parent=0
    _
  %s14 = ssub.s32 1, %s12
  %s15 = scalar_select 0, %s14, %s12
  // Predicated region
  $region2: #{lstm_forward.1} parent=0 // pred_check
    _
  $region3: #{lstm_forward.1} parent=0 // pred_check_branch
    %17 = sbr.rel (0) target = $region5
  $region4: #{lstm_forward.1} parent=0 // pred_region
    _
  $region5: #{lstm_forward.1} parent=0 // pred_fallthru
    _
  // Predicated region
  $region6: #{lstm_forward.1} parent=0 // pred_check
    _
  $region7: #{lstm_forward.1} parent=0 // pred_check_branch
    %19 = sbr.rel (0) target = $region9
  $region8: #{lstm_forward.1} parent=0 // pred_region
    _
  $region9: #{lstm_forward.1} parent=0 // pred_fallthru
    _
  // Predicated region
  $region10: #{lstm_forward.1} parent=0 // pred_check
    _
  $region11: #{lstm_forward.1} parent=0 // pred_check_branch
    %21 = sbr.rel (0) target = $region13
  $region12: #{lstm_forward.1} parent=0 // pred_region
    _
  $region13: #{lstm_forward.1} parent=0 // pred_fallthru
    _
  // Predicated region
  $region14: #{lstm_forward.1} parent=0 // pred_check
    _
  $region15: #{lstm_forward.1} parent=0 // pred_check_branch
    %23 = sbr.rel (0) target = $region17
  $region16: #{lstm_forward.1} parent=0 // pred_region
    _
  $region17: #{lstm_forward.1} parent=0 // pred_fallthru
    _
  // Predicated region
  $region18: #{lstm_forward.1} parent=0 // pred_check
    _
  $region19: #{lstm_forward.1} parent=0 // pred_check_branch
    %25 = sbr.rel (0) target = $region21
  $region20: #{lstm_forward.1} parent=0 // pred_region
    _
  $region21: #{lstm_forward.1} parent=0 // pred_fallthru
    _
  // Predicated region
  $region22: #{lstm_forward.1} parent=0 // pred_check
    _
  $region23: #{lstm_forward.1} parent=0 // pred_check_branch
    %27 = sbr.rel (0) target = $region25
  $region24: #{lstm_forward.1} parent=0 // pred_region
    _
  $region25: #{lstm_forward.1} parent=0 // pred_fallthru
    _
  // Predicated region
  $region26: #{lstm_forward.1} parent=0 // pred_check
    _
  $region27: #{lstm_forward.1} parent=0 // pred_check_branch
    %29 = sbr.rel (0) target = $region29
  $region28: #{lstm_forward.1} parent=0 // pred_region
    _
  $region29: #{lstm_forward.1} parent=0 // pred_fallthru
    _
  // Predicated region
  $region30: #{lstm_forward.1} parent=0 // pred_check
    _
  $region31: #{lstm_forward.1} parent=0 // pred_check_branch
    %31 = sbr.rel (0) target = $region33
  $region32: #{lstm_forward.1} parent=0 // pred_region
    _
  $region33: #{lstm_forward.1} parent=0 // pred_fallthru
    _
  %v33 = vld [vmem:[%s0] sm:$0xff]
  %v34 = vld [vmem:[%s0 + $0x8] sm:$0xff]
  %v35 = vld [vmem:[%s0 + $0x10] sm:$0xff]
  %v36 = vld [vmem:[%s0 + $0x18] sm:$0xff]
  %v37 = vld [vmem:[%s0 + $0x20] sm:$0xff]
  %v38 = vld [vmem:[%s0 + $0x28] sm:$0xff]
  %v39 = vld [vmem:[%s0 + $0x30] sm:$0xff]
  %v40 = vld [vmem:[%s0 + $0x38] sm:$0xff]
  %v41 = vld [vmem:[%s1] sm:$0xff]
  %v42 = vld [vmem:[%s2] sm:$0x1]
  %v44 = vlaneseq
  %v45 = vshrl.u32 %v44, 7
  %v46 = vsub.s32 0, %v45
  %v47 = vrot.slane %v42, %v46
  %vm49 = vcmask 64512
  %v51 = vsel %vm49, %v33, 0
  %v54 = vsel %vm49, %v34, 0
  %v57 = vsel %vm49, %v35, 0
  %v60 = vsel %vm49, %v36, 0
  %v63 = vsel %vm49, %v37, 0
  %v66 = vsel %vm49, %v38, 0
  %v69 = vsel %vm49, %v39, 0
  %v72 = vsel %vm49, %v40, 0
  %74 = vmatprep.subr.mxu0 0.0
  %75 = vmatpush1.msra.mxu0 0.0
  %76 = vmatprep.subr.mxu0 0.0
  %77 = vmatpush1.msra.mxu0 0.0
  %78 = vmatprep.subr.mxu0 0.0
  %79 = vmatpush1.msra.mxu0 0.0
  %80 = vmatprep.subr.mxu0 0.0
  %81 = vmatpush1.msra.mxu0 0.0
  %82 = vmatprep.subr.mxu0 0.0
  %83 = vmatpush1.msra.mxu0 0.0
  %84 = vmatprep.subr.mxu0 0.0
  %85 = vmatpush1.msra.mxu0 0.0
  %86 = vmatprep.subr.mxu0 0.0
  %87 = vmatpush1.msra.mxu0 0.0
  %88 = vmatprep.subr.mxu0 0.0
  %89 = vmatpush1.msra.mxu0 0.0
  %90 = vmatprep.subr.mxu0 0.0
  %91 = vmatpush1.msra.mxu0 0.0
  %92 = vmatprep.subr.mxu0 0.0
  %93 = vmatpush1.msra.mxu0 0.0
  %94 = vmatprep.subr.mxu0 0.0
  %95 = vmatpush1.msra.mxu0 0.0
  %96 = vmatprep.subr.mxu0 0.0
  %97 = vmatpush1.msra.mxu0 0.0
  %98 = vmatprep.subr.mxu0 0.0
  %99 = vmatpush1.msra.mxu0 0.0
  %100 = vmatprep.subr.mxu0 0.0
  %101 = vmatpush1.msra.mxu0 0.0
  %102 = vmatprep.subr.mxu0 0.0
  %103 = vmatpush1.msra.mxu0 0.0
  %104 = vmatprep.subr.mxu0 0.0
  %105 = vmatpush1.msra.mxu0 %v41
  %106 = vmatprep.subr.mxu0 0.0
  %107 = vmatpush2.msra.mxu0 0.0
  %108 = vmatprep.subr.mxu0 0.0
  %109 = vmatpush2.msra.mxu0 0.0
  %110 = vmatprep.subr.mxu0 0.0
  %111 = vmatpush2.msra.mxu0 0.0
  %112 = vmatprep.subr.mxu0 0.0
  %113 = vmatpush2.msra.mxu0 0.0
  %114 = vmatprep.subr.mxu0 0.0
  %115 = vmatpush2.msra.mxu0 0.0
  %116 = vmatprep.subr.mxu0 0.0
  %117 = vmatpush2.msra.mxu0 0.0
  %118 = vmatprep.subr.mxu0 0.0
  %119 = vmatpush2.msra.mxu0 0.0
  %120 = vmatprep.subr.mxu0 0.0
  %121 = vmatpush2.msra.mxu0 0.0
  %122 = vmatprep.subr.mxu0 0.0
  %123 = vmatpush2.msra.mxu0 0.0
  %124 = vmatprep.subr.mxu0 0.0
  %125 = vmatpush2.msra.mxu0 0.0
  %126 = vmatprep.subr.mxu0 0.0
  %127 = vmatpush2.msra.mxu0 0.0
  %128 = vmatprep.subr.mxu0 0.0
  %129 = vmatpush2.msra.mxu0 0.0
  %130 = vmatprep.subr.mxu0 0.0
  %131 = vmatpush2.msra.mxu0 0.0
  %132 = vmatprep.subr.mxu0 0.0
  %133 = vmatpush2.msra.mxu0 0.0
  %134 = vmatprep.subr.mxu0 0.0
  %135 = vmatpush2.msra.mxu0 0.0
  %136 = vmatprep.subr.mxu0 0.0
  %137 = vmatpush2.msra.mxu0 0.0
  %138 = vmatprep.mubr.f32.mxu0 0.0
  %139 = vmatmul.mubr.f32.gmra.mxu0 %v51
  %v140 = vpop.f32.mrf.mxu0
  %v141 = vadd.f32 %v47, %v140
  %v142 = vpop.f32.mrf.mxu0
  %143 = vmatprep.mubr.f32.mxu0 0.0
  %144 = vmatmul.mubr.f32.gmra.mxu0 %v54
  %v145 = vpop.f32.mrf.mxu0
  %v146 = vadd.f32 %v47, %v145
  %v147 = vpop.f32.mrf.mxu0
  %148 = vmatprep.mubr.f32.mxu0 0.0
  %149 = vmatmul.mubr.f32.gmra.mxu0 %v57
  %v150 = vpop.f32.mrf.mxu0
  %v151 = vadd.f32 %v47, %v150
  %v152 = vpop.f32.mrf.mxu0
  %153 = vmatprep.mubr.f32.mxu0 0.0
  %154 = vmatmul.mubr.f32.gmra.mxu0 %v60
  %v155 = vpop.f32.mrf.mxu0
  %v156 = vadd.f32 %v47, %v155
  %v157 = vpop.f32.mrf.mxu0
  %158 = vmatprep.mubr.f32.mxu0 0.0
  %159 = vmatmul.mubr.f32.gmra.mxu0 %v63
  %v160 = vpop.f32.mrf.mxu0
  %v161 = vadd.f32 %v47, %v160
  %v162 = vpop.f32.mrf.mxu0
  %163 = vmatprep.mubr.f32.mxu0 0.0
  %164 = vmatmul.mubr.f32.gmra.mxu0 %v66
  %v165 = vpop.f32.mrf.mxu0
  %v166 = vadd.f32 %v47, %v165
  %v167 = vpop.f32.mrf.mxu0
  %168 = vmatprep.mubr.f32.mxu0 0.0
  %169 = vmatmul.mubr.f32.gmra.mxu0 %v69
  %v170 = vpop.f32.mrf.mxu0
  %v171 = vadd.f32 %v47, %v170
  %v172 = vpop.f32.mrf.mxu0
  %173 = vmatprep.mubr.f32.mxu0 0.0
  %174 = vmatmul.mubr.f32.gmra.mxu0 %v72
  %v175 = vpop.f32.mrf.mxu0
  %v176 = vadd.f32 %v47, %v175
  %v177 = vpop.f32.mrf.mxu0
  %178 = vdwg.mxu0
  %179 = vst [vmem:[#allocation2] sm:$0xff] %v141
  %180 = vst [vmem:[#allocation2 + $0x8] sm:$0xff] %v146
  %181 = vst [vmem:[#allocation2 + $0x10] sm:$0xff] %v151
  %182 = vst [vmem:[#allocation2 + $0x18] sm:$0xff] %v156
  %183 = vst [vmem:[#allocation2 + $0x20] sm:$0xff] %v161
  %184 = vst [vmem:[#allocation2 + $0x28] sm:$0xff] %v166
  %185 = vst [vmem:[#allocation2 + $0x30] sm:$0xff] %v171
  %186 = vst [vmem:[#allocation2 + $0x38] sm:$0xff] %v176
  %v187 = vld [vmem:[%s3] sm:$0xf]
  %v188 = vld [vmem:[%s3 + $0x4] sm:$0xf]
  %v189 = vld [vmem:[#allocation2] sm:$0xff]
  %v192 = vunpack.c.l.b16 %v187
  %v193 = vunpack.c.l.b16 %v188
  %v194 = vpack.c.b16 %v193, %v192
  %vm196 = vcmask 130048
  %v198 = vsel %vm196, 0, 0
  %200 = vmatprep.subr.bf16.mxu0 0
  %201 = vmatpush1.bf16.msra.mxu0 0
  %202 = vmatprep.subr.bf16.mxu0 0
  %203 = vmatpush1.bf16.msra.mxu0 0
  %204 = vmatprep.subr.bf16.mxu0 0
  %205 = vmatpush1.bf16.msra.mxu0 0
  %206 = vmatprep.subr.bf16.mxu0 0
  %207 = vmatpush1.bf16.msra.mxu0 0
  %208 = vmatprep.subr.bf16.mxu0 0
  %209 = vmatpush1.bf16.msra.mxu0 0
  %210 = vmatprep.subr.bf16.mxu0 0
  %211 = vmatpush1.bf16.msra.mxu0 0
  %212 = vmatprep.subr.bf16.mxu0 0
  %213 = vmatpush1.bf16.msra.mxu0 0
  %214 = vmatprep.subr.bf16.mxu0 0
  %215 = vmatpush1.bf16.msra.mxu0 %v194
  %216 = vmatprep.subr.bf16.mxu0 0
  %217 = vmatpush2.bf16.msra.mxu0 0
  %218 = vmatprep.subr.bf16.mxu0 0
  %219 = vmatpush2.bf16.msra.mxu0 0
  %220 = vmatprep.subr.bf16.mxu0 0
  %221 = vmatpush2.bf16.msra.mxu0 0
  %222 = vmatprep.subr.bf16.mxu0 0
  %223 = vmatpush2.bf16.msra.mxu0 0
  %224 = vmatprep.subr.bf16.mxu0 0
  %225 = vmatpush2.bf16.msra.mxu0 0
  %226 = vmatprep.subr.bf16.mxu0 0
  %227 = vmatpush2.bf16.msra.mxu0 0
  %228 = vmatprep.subr.bf16.mxu0 0
  %229 = vmatpush2.bf16.msra.mxu0 0
  %230 = vmatprep.subr.bf16.mxu0 0
  %231 = vmatpush2.bf16.msra.mxu0 0
  %232 = vmatprep.mubr.bf16.mxu0 0
  %233 = vmatmul.mubr.bf16.gmra.mxu0 %v198
  %v234 = vpop.f32.mrf.mxu0
  %v235 = vadd.f32 %v189, %v234
  %v236 = vpop.f32.mrf.mxu0
  %v237 = vpop.f32.mrf.mxu0
  %v238 = vpop.f32.mrf.mxu0
  %239 = vdwg.mxu0
  %v240 = vtanh.pop %v235
  %v241 = vmul.f32 %v240, 0.5
  %v242 = vadd.f32 %v241, 0.5
  %v243 = vmul.f32 %v242, 0.0
  %245 = vrot.lane.b32.xlu0 %v240, 96
  %v246 = vpop.permute.xlu0 %245
  %v248 = vmul.f32 %v242, %v246
  %250 = vrot.lane.b32.xlu0 %v248, 16
  %v251 = vpop.permute.xlu0 %250
  %v253 = vadd.f32 %v243, %v251
  %v254 = vtanh.pop %v253
  %256 = vrot.lane.b32.xlu0 %v254, 32
  %v257 = vpop.permute.xlu0 %256
  %v259 = vmul.f32 %v242, %v257
  %261 = vrot.lane.b32.xlu0 %v259, 80
  %v262 = vpop.permute.xlu0 %261
  %264 = vst.msk [vmem:[#allocation3] sm:$0xff] %vm196, %v262
  %v265 = vpack.c.bf16 %v259, %v259
  %s266 = scalar_lea.vmem [#allocation2], 8
  %v267 = vld [vmem:[%s266] sm:$0xff]
  %269 = vrot.lane.b32.xlu0 %v265, 80
  %v270 = vpop.permute.xlu0 %269
  %v272 = vsel %vm196, %v270, 0
  %274 = vmatprep.subr.bf16.mxu0 0
  %275 = vmatpush1.bf16.msra.mxu0 0
  %276 = vmatprep.subr.bf16.mxu0 0
  %277 = vmatpush1.bf16.msra.mxu0 0
  %278 = vmatprep.subr.bf16.mxu0 0
  %279 = vmatpush1.bf16.msra.mxu0 0
  %280 = vmatprep.subr.bf16.mxu0 0
  %281 = vmatpush1.bf16.msra.mxu0 0
  %282 = vmatprep.subr.bf16.mxu0 0
  %283 = vmatpush1.bf16.msra.mxu0 0
  %284 = vmatprep.subr.bf16.mxu0 0
  %285 = vmatpush1.bf16.msra.mxu0 0
  %286 = vmatprep.subr.bf16.mxu0 0
  %287 = vmatpush1.bf16.msra.mxu0 0
  %288 = vmatprep.subr.bf16.mxu0 0
  %289 = vmatpush1.bf16.msra.mxu0 %v194
  %290 = vmatprep.subr.bf16.mxu0 0
  %291 = vmatpush2.bf16.msra.mxu0 0
  %292 = vmatprep.subr.bf16.mxu0 0
  %293 = vmatpush2.bf16.msra.mxu0 0
  %294 = vmatprep.subr.bf16.mxu0 0
  %295 = vmatpush2.bf16.msra.mxu0 0
  %296 = vmatprep.subr.bf16.mxu0 0
  %297 = vmatpush2.bf16.msra.mxu0 0
  %298 = vmatprep.subr.bf16.mxu0 0
  %299 = vmatpush2.bf16.msra.mxu0 0
  %300 = vmatprep.subr.bf16.mxu0 0
  %301 = vmatpush2.bf16.msra.mxu0 0
  %302 = vmatprep.subr.bf16.mxu0 0
  %303 = vmatpush2.bf16.msra.mxu0 0
  %304 = vmatprep.subr.bf16.mxu0 0
  %305 = vmatpush2.bf16.msra.mxu0 0
  %306 = vmatprep.mubr.bf16.mxu0 0
  %307 = vmatmul.mubr.bf16.gmra.mxu0 %v272
  %v308 = vpop.f32.mrf.mxu0
  %v309 = vadd.f32 %v267, %v308
  %v310 = vpop.f32.mrf.mxu0
  %v311 = vpop.f32.mrf.mxu0
  %v312 = vpop.f32.mrf.mxu0
  %313 = vdwg.mxu0
  %v314 = vtanh.pop %v309
  %v315 = vmul.f32 %v314, 0.5
  %v316 = vadd.f32 %v315, 0.5
  %v317 = vmul.f32 %v316, %v253
  %319 = vrot.lane.b32.xlu0 %v314, 96
  %v320 = vpop.permute.xlu0 %319
  %v322 = vmul.f32 %v316, %v320
  %324 = vrot.lane.b32.xlu0 %v322, 16
  %v325 = vpop.permute.xlu0 %324
  %v327 = vadd.f32 %v317, %v325
  %v328 = vtanh.pop %v327
  %330 = vrot.lane.b32.xlu0 %v328, 32
  %v331 = vpop.permute.xlu0 %330
  %v333 = vmul.f32 %v316, %v331
  %335 = vrot.lane.b32.xlu0 %v333, 80
  %v336 = vpop.permute.xlu0 %335
  %s338 = scalar_lea.vmem [#allocation3], 8
  %339 = vst.msk [vmem:[%s338] sm:$0xff] %vm196, %v336
  %v340 = vpack.c.bf16 %v333, %v333
  %s341 = scalar_lea.vmem [#allocation2], 16
  %v342 = vld [vmem:[%s341] sm:$0xff]
  %344 = vrot.lane.b32.xlu0 %v340, 80
  %v345 = vpop.permute.xlu0 %344
  %v347 = vsel %vm196, %v345, 0
  %349 = vmatprep.subr.bf16.mxu0 0
  %350 = vmatpush1.bf16.msra.mxu0 0
  %351 = vmatprep.subr.bf16.mxu0 0
  %352 = vmatpush1.bf16.msra.mxu0 0
  %353 = vmatprep.subr.bf16.mxu0 0
  %354 = vmatpush1.bf16.msra.mxu0 0
  %355 = vmatprep.subr.bf16.mxu0 0
  %356 = vmatpush1.bf16.msra.mxu0 0
  %357 = vmatprep.subr.bf16.mxu0 0
  %358 = vmatpush1.bf16.msra.mxu0 0
  %359 = vmatprep.subr.bf16.mxu0 0
  %360 = vmatpush1.bf16.msra.mxu0 0
  %361 = vmatprep.subr.bf16.mxu0 0
  %362 = vmatpush1.bf16.msra.mxu0 0
  %363 = vmatprep.subr.bf16.mxu0 0
  %364 = vmatpush1.bf16.msra.mxu0 %v194
  %365 = vmatprep.subr.bf16.mxu0 0
  %366 = vmatpush2.bf16.msra.mxu0 0
  %367 = vmatprep.subr.bf16.mxu0 0
  %368 = vmatpush2.bf16.msra.mxu0 0
  %369 = vmatprep.subr.bf16.mxu0 0
  %370 = vmatpush2.bf16.msra.mxu0 0
  %371 = vmatprep.subr.bf16.mxu0 0
  %372 = vmatpush2.bf16.msra.mxu0 0
  %373 = vmatprep.subr.bf16.mxu0 0
  %374 = vmatpush2.bf16.msra.mxu0 0
  %375 = vmatprep.subr.bf16.mxu0 0
  %376 = vmatpush2.bf16.msra.mxu0 0
  %377 = vmatprep.subr.bf16.mxu0 0
  %378 = vmatpush2.bf16.msra.mxu0 0
  %379 = vmatprep.subr.bf16.mxu0 0
  %380 = vmatpush2.bf16.msra.mxu0 0
  %381 = vmatprep.mubr.bf16.mxu0 0
  %382 = vmatmul.mubr.bf16.gmra.mxu0 %v347
  %v383 = vpop.f32.mrf.mxu0
  %v384 = vadd.f32 %v342, %v383
  %v385 = vpop.f32.mrf.mxu0
  %v386 = vpop.f32.mrf.mxu0
  %v387 = vpop.f32.mrf.mxu0
  %388 = vdwg.mxu0
  %v389 = vtanh.pop %v384
  %v390 = vmul.f32 %v389, 0.5
  %v391 = vadd.f32 %v390, 0.5
  %v392 = vmul.f32 %v391, %v327
  %394 = vrot.lane.b32.xlu0 %v389, 96
  %v395 = vpop.permute.xlu0 %394
  %v397 = vmul.f32 %v391, %v395
  %399 = vrot.lane.b32.xlu0 %v397, 16
  %v400 = vpop.permute.xlu0 %399
  %v402 = vadd.f32 %v392, %v400
  %v403 = vtanh.pop %v402
  %405 = vrot.lane.b32.xlu0 %v403, 32
  %v406 = vpop.permute.xlu0 %405
  %v408 = vmul.f32 %v391, %v406
  %410 = vrot.lane.b32.xlu0 %v408, 80
  %v411 = vpop.permute.xlu0 %410
  %s413 = scalar_lea.vmem [#allocation3], 16
  %414 = vst.msk [vmem:[%s413] sm:$0xff] %vm196, %v411
  %v415 = vpack.c.bf16 %v408, %v408
  %s416 = scalar_lea.vmem [#allocation2], 24
  %v417 = vld [vmem:[%s416] sm:$0xff]
  %419 = vrot.lane.b32.xlu0 %v415, 80
  %v420 = vpop.permute.xlu0 %419
  %v422 = vsel %vm196, %v420, 0
  %424 = vmatprep.subr.bf16.mxu0 0
  %425 = vmatpush1.bf16.msra.mxu0 0
  %426 = vmatprep.subr.bf16.mxu0 0
  %427 = vmatpush1.bf16.msra.mxu0 0
  %428 = vmatprep.subr.bf16.mxu0 0
  %429 = vmatpush1.bf16.msra.mxu0 0
  %430 = vmatprep.subr.bf16.mxu0 0
  %431 = vmatpush1.bf16.msra.mxu0 0
  %432 = vmatprep.subr.bf16.mxu0 0
  %433 = vmatpush1.bf16.msra.mxu0 0
  %434 = vmatprep.subr.bf16.mxu0 0
  %435 = vmatpush1.bf16.msra.mxu0 0
  %436 = vmatprep.subr.bf16.mxu0 0
  %437 = vmatpush1.bf16.msra.mxu0 0
  %438 = vmatprep.subr.bf16.mxu0 0
  %439 = vmatpush1.bf16.msra.mxu0 %v194
  %440 = vmatprep.subr.bf16.mxu0 0
  %441 = vmatpush2.bf16.msra.mxu0 0
  %442 = vmatprep.subr.bf16.mxu0 0
  %443 = vmatpush2.bf16.msra.mxu0 0
  %444 = vmatprep.subr.bf16.mxu0 0
  %445 = vmatpush2.bf16.msra.mxu0 0
  %446 = vmatprep.subr.bf16.mxu0 0
  %447 = vmatpush2.bf16.msra.mxu0 0
  %448 = vmatprep.subr.bf16.mxu0 0
  %449 = vmatpush2.bf16.msra.mxu0 0
  %450 = vmatprep.subr.bf16.mxu0 0
  %451 = vmatpush2.bf16.msra.mxu0 0
  %452 = vmatprep.subr.bf16.mxu0 0
  %453 = vmatpush2.bf16.msra.mxu0 0
  %454 = vmatprep.subr.bf16.mxu0 0
  %455 = vmatpush2.bf16.msra.mxu0 0
  %456 = vmatprep.mubr.bf16.mxu0 0
  %457 = vmatmul.mubr.bf16.gmra.mxu0 %v422
  %v458 = vpop.f32.mrf.mxu0
  %v459 = vadd.f32 %v417, %v458
  %v460 = vpop.f32.mrf.mxu0
  %v461 = vpop.f32.mrf.mxu0
  %v462 = vpop.f32.mrf.mxu0
  %463 = vdwg.mxu0
  %v464 = vtanh.pop %v459
  %v465 = vmul.f32 %v464, 0.5
  %v466 = vadd.f32 %v465, 0.5
  %v467 = vmul.f32 %v466, %v402
  %469 = vrot.lane.b32.xlu0 %v464, 96
  %v470 = vpop.permute.xlu0 %469
  %v472 = vmul.f32 %v466, %v470
  %474 = vrot.lane.b32.xlu0 %v472, 16
  %v475 = vpop.permute.xlu0 %474
  %v477 = vadd.f32 %v467, %v475
  %v478 = vtanh.pop %v477
  %480 = vrot.lane.b32.xlu0 %v478, 32
  %v481 = vpop.permute.xlu0 %480
  %v483 = vmul.f32 %v466, %v481
  %485 = vrot.lane.b32.xlu0 %v483, 80
  %v486 = vpop.permute.xlu0 %485
  %s488 = scalar_lea.vmem [#allocation3], 24
  %489 = vst.msk [vmem:[%s488] sm:$0xff] %vm196, %v486
  %v490 = vpack.c.bf16 %v483, %v483
  %s491 = scalar_lea.vmem [#allocation2], 32
  %v492 = vld [vmem:[%s491] sm:$0xff]
  %494 = vrot.lane.b32.xlu0 %v490, 80
  %v495 = vpop.permute.xlu0 %494
  %v497 = vsel %vm196, %v495, 0
  %499 = vmatprep.subr.bf16.mxu0 0
  %500 = vmatpush1.bf16.msra.mxu0 0
  %501 = vmatprep.subr.bf16.mxu0 0
  %502 = vmatpush1.bf16.msra.mxu0 0
  %503 = vmatprep.subr.bf16.mxu0 0
  %504 = vmatpush1.bf16.msra.mxu0 0
  %505 = vmatprep.subr.bf16.mxu0 0
  %506 = vmatpush1.bf16.msra.mxu0 0
  %507 = vmatprep.subr.bf16.mxu0 0
  %508 = vmatpush1.bf16.msra.mxu0 0
  %509 = vmatprep.subr.bf16.mxu0 0
  %510 = vmatpush1.bf16.msra.mxu0 0
  %511 = vmatprep.subr.bf16.mxu0 0
  %512 = vmatpush1.bf16.msra.mxu0 0
  %513 = vmatprep.subr.bf16.mxu0 0
  %514 = vmatpush1.bf16.msra.mxu0 %v194
  %515 = vmatprep.subr.bf16.mxu0 0
  %516 = vmatpush2.bf16.msra.mxu0 0
  %517 = vmatprep.subr.bf16.mxu0 0
  %518 = vmatpush2.bf16.msra.mxu0 0
  %519 = vmatprep.subr.bf16.mxu0 0
  %520 = vmatpush2.bf16.msra.mxu0 0
  %521 = vmatprep.subr.bf16.mxu0 0
  %522 = vmatpush2.bf16.msra.mxu0 0
  %523 = vmatprep.subr.bf16.mxu0 0
  %524 = vmatpush2.bf16.msra.mxu0 0
  %525 = vmatprep.subr.bf16.mxu0 0
  %526 = vmatpush2.bf16.msra.mxu0 0
  %527 = vmatprep.subr.bf16.mxu0 0
  %528 = vmatpush2.bf16.msra.mxu0 0
  %529 = vmatprep.subr.bf16.mxu0 0
  %530 = vmatpush2.bf16.msra.mxu0 0
  %531 = vmatprep.mubr.bf16.mxu0 0
  %532 = vmatmul.mubr.bf16.gmra.mxu0 %v497
  %v533 = vpop.f32.mrf.mxu0
  %v534 = vadd.f32 %v492, %v533
  %v535 = vpop.f32.mrf.mxu0
  %v536 = vpop.f32.mrf.mxu0
  %v537 = vpop.f32.mrf.mxu0
  %538 = vdwg.mxu0
  %v539 = vtanh.pop %v534
  %v540 = vmul.f32 %v539, 0.5
  %v541 = vadd.f32 %v540, 0.5
  %v542 = vmul.f32 %v541, %v477
  %544 = vrot.lane.b32.xlu0 %v539, 96
  %v545 = vpop.permute.xlu0 %544
  %v547 = vmul.f32 %v541, %v545
  %549 = vrot.lane.b32.xlu0 %v547, 16
  %v550 = vpop.permute.xlu0 %549
  %v552 = vadd.f32 %v542, %v550
  %v553 = vtanh.pop %v552
  %555 = vrot.lane.b32.xlu0 %v553, 32
  %v556 = vpop.permute.xlu0 %555
  %v558 = vmul.f32 %v541, %v556
  %560 = vrot.lane.b32.xlu0 %v558, 80
  %v561 = vpop.permute.xlu0 %560
  %s563 = scalar_lea.vmem [#allocation3], 32
  %564 = vst.msk [vmem:[%s563] sm:$0xff] %vm196, %v561
  %v565 = vpack.c.bf16 %v558, %v558
  %s566 = scalar_lea.vmem [#allocation2], 40
  %v567 = vld [vmem:[%s566] sm:$0xff]
  %569 = vrot.lane.b32.xlu0 %v565, 80
  %v570 = vpop.permute.xlu0 %569
  %v572 = vsel %vm196, %v570, 0
  %574 = vmatprep.subr.bf16.mxu0 0
  %575 = vmatpush1.bf16.msra.mxu0 0
  %576 = vmatprep.subr.bf16.mxu0 0
  %577 = vmatpush1.bf16.msra.mxu0 0
  %578 = vmatprep.subr.bf16.mxu0 0
  %579 = vmatpush1.bf16.msra.mxu0 0
  %580 = vmatprep.subr.bf16.mxu0 0
  %581 = vmatpush1.bf16.msra.mxu0 0
  %582 = vmatprep.subr.bf16.mxu0 0
  %583 = vmatpush1.bf16.msra.mxu0 0
  %584 = vmatprep.subr.bf16.mxu0 0
  %585 = vmatpush1.bf16.msra.mxu0 0
  %586 = vmatprep.subr.bf16.mxu0 0
  %587 = vmatpush1.bf16.msra.mxu0 0
  %588 = vmatprep.subr.bf16.mxu0 0
  %589 = vmatpush1.bf16.msra.mxu0 %v194
  %590 = vmatprep.subr.bf16.mxu0 0
  %591 = vmatpush2.bf16.msra.mxu0 0
  %592 = vmatprep.subr.bf16.mxu0 0
  %593 = vmatpush2.bf16.msra.mxu0 0
  %594 = vmatprep.subr.bf16.mxu0 0
  %595 = vmatpush2.bf16.msra.mxu0 0
  %596 = vmatprep.subr.bf16.mxu0 0
  %597 = vmatpush2.bf16.msra.mxu0 0
  %598 = vmatprep.subr.bf16.mxu0 0
  %599 = vmatpush2.bf16.msra.mxu0 0
  %600 = vmatprep.subr.bf16.mxu0 0
  %601 = vmatpush2.bf16.msra.mxu0 0
  %602 = vmatprep.subr.bf16.mxu0 0
  %603 = vmatpush2.bf16.msra.mxu0 0
  %604 = vmatprep.subr.bf16.mxu0 0
  %605 = vmatpush2.bf16.msra.mxu0 0
  %606 = vmatprep.mubr.bf16.mxu0 0
  %607 = vmatmul.mubr.bf16.gmra.mxu0 %v572
  %v608 = vpop.f32.mrf.mxu0
  %v609 = vadd.f32 %v567, %v608
  %v610 = vpop.f32.mrf.mxu0
  %v611 = vpop.f32.mrf.mxu0
  %v612 = vpop.f32.mrf.mxu0
  %613 = vdwg.mxu0
  %v614 = vtanh.pop %v609
  %v615 = vmul.f32 %v614, 0.5
  %v616 = vadd.f32 %v615, 0.5
  %v617 = vmul.f32 %v616, %v552
  %619 = vrot.lane.b32.xlu0 %v614, 96
  %v620 = vpop.permute.xlu0 %619
  %v622 = vmul.f32 %v616, %v620
  %624 = vrot.lane.b32.xlu0 %v622, 16
  %v625 = vpop.permute.xlu0 %624
  %v627 = vadd.f32 %v617, %v625
  %v628 = vtanh.pop %v627
  %630 = vrot.lane.b32.xlu0 %v628, 32
  %v631 = vpop.permute.xlu0 %630
  %v633 = vmul.f32 %v616, %v631
  %635 = vrot.lane.b32.xlu0 %v633, 80
  %v636 = vpop.permute.xlu0 %635
  %s638 = scalar_lea.vmem [#allocation3], 40
  %639 = vst.msk [vmem:[%s638] sm:$0xff] %vm196, %v636
  %v640 = vpack.c.bf16 %v633, %v633
  %s641 = scalar_lea.vmem [#allocation2], 48
  %v642 = vld [vmem:[%s641] sm:$0xff]
  %644 = vrot.lane.b32.xlu0 %v640, 80
  %v645 = vpop.permute.xlu0 %644
  %v647 = vsel %vm196, %v645, 0
  %649 = vmatprep.subr.bf16.mxu0 0
  %650 = vmatpush1.bf16.msra.mxu0 0
  %651 = vmatprep.subr.bf16.mxu0 0
  %652 = vmatpush1.bf16.msra.mxu0 0
  %653 = vmatprep.subr.bf16.mxu0 0
  %654 = vmatpush1.bf16.msra.mxu0 0
  %655 = vmatprep.subr.bf16.mxu0 0
  %656 = vmatpush1.bf16.msra.mxu0 0
  %657 = vmatprep.subr.bf16.mxu0 0
  %658 = vmatpush1.bf16.msra.mxu0 0
  %659 = vmatprep.subr.bf16.mxu0 0
  %660 = vmatpush1.bf16.msra.mxu0 0
  %661 = vmatprep.subr.bf16.mxu0 0
  %662 = vmatpush1.bf16.msra.mxu0 0
  %663 = vmatprep.subr.bf16.mxu0 0
  %664 = vmatpush1.bf16.msra.mxu0 %v194
  %665 = vmatprep.subr.bf16.mxu0 0
  %666 = vmatpush2.bf16.msra.mxu0 0
  %667 = vmatprep.subr.bf16.mxu0 0
  %668 = vmatpush2.bf16.msra.mxu0 0
  %669 = vmatprep.subr.bf16.mxu0 0
  %670 = vmatpush2.bf16.msra.mxu0 0
  %671 = vmatprep.subr.bf16.mxu0 0
  %672 = vmatpush2.bf16.msra.mxu0 0
  %673 = vmatprep.subr.bf16.mxu0 0
  %674 = vmatpush2.bf16.msra.mxu0 0
  %675 = vmatprep.subr.bf16.mxu0 0
  %676 = vmatpush2.bf16.msra.mxu0 0
  %677 = vmatprep.subr.bf16.mxu0 0
  %678 = vmatpush2.bf16.msra.mxu0 0
  %679 = vmatprep.subr.bf16.mxu0 0
  %680 = vmatpush2.bf16.msra.mxu0 0
  %681 = vmatprep.mubr.bf16.mxu0 0
  %682 = vmatmul.mubr.bf16.gmra.mxu0 %v647
  %v683 = vpop.f32.mrf.mxu0
  %v684 = vadd.f32 %v642, %v683
  %v685 = vpop.f32.mrf.mxu0
  %v686 = vpop.f32.mrf.mxu0
  %v687 = vpop.f32.mrf.mxu0
  %688 = vdwg.mxu0
  %v689 = vtanh.pop %v684
  %v690 = vmul.f32 %v689, 0.5
  %v691 = vadd.f32 %v690, 0.5
  %v692 = vmul.f32 %v691, %v627
  %694 = vrot.lane.b32.xlu0 %v689, 96
  %v695 = vpop.permute.xlu0 %694
  %v697 = vmul.f32 %v691, %v695
  %699 = vrot.lane.b32.xlu0 %v697, 16
  %v700 = vpop.permute.xlu0 %699
  %v702 = vadd.f32 %v692, %v700
  %v703 = vtanh.pop %v702
  %705 = vrot.lane.b32.xlu0 %v703, 32
  %v706 = vpop.permute.xlu0 %705
  %v708 = vmul.f32 %v691, %v706
  %710 = vrot.lane.b32.xlu0 %v708, 80
  %v711 = vpop.permute.xlu0 %710
  %s713 = scalar_lea.vmem [#allocation3], 48
  %714 = vst.msk [vmem:[%s713] sm:$0xff] %vm196, %v711
  %v715 = vpack.c.bf16 %v708, %v708
  %s716 = scalar_lea.vmem [#allocation2], 56
  %v717 = vld [vmem:[%s716] sm:$0xff]
  %719 = vrot.lane.b32.xlu0 %v715, 80
  %v720 = vpop.permute.xlu0 %719
  %v722 = vsel %vm196, %v720, 0
  %724 = vmatprep.subr.bf16.mxu0 0
  %725 = vmatpush1.bf16.msra.mxu0 0
  %726 = vmatprep.subr.bf16.mxu0 0
  %727 = vmatpush1.bf16.msra.mxu0 0
  %728 = vmatprep.subr.bf16.mxu0 0
  %729 = vmatpush1.bf16.msra.mxu0 0
  %730 = vmatprep.subr.bf16.mxu0 0
  %731 = vmatpush1.bf16.msra.mxu0 0
  %732 = vmatprep.subr.bf16.mxu0 0
  %733 = vmatpush1.bf16.msra.mxu0 0
  %734 = vmatprep.subr.bf16.mxu0 0
  %735 = vmatpush1.bf16.msra.mxu0 0
  %736 = vmatprep.subr.bf16.mxu0 0
  %737 = vmatpush1.bf16.msra.mxu0 0
  %738 = vmatprep.subr.bf16.mxu0 0
  %739 = vmatpush1.bf16.msra.mxu0 %v194
  %740 = vmatprep.subr.bf16.mxu0 0
  %741 = vmatpush2.bf16.msra.mxu0 0
  %742 = vmatprep.subr.bf16.mxu0 0
  %743 = vmatpush2.bf16.msra.mxu0 0
  %744 = vmatprep.subr.bf16.mxu0 0
  %745 = vmatpush2.bf16.msra.mxu0 0
  %746 = vmatprep.subr.bf16.mxu0 0
  %747 = vmatpush2.bf16.msra.mxu0 0
  %748 = vmatprep.subr.bf16.mxu0 0
  %749 = vmatpush2.bf16.msra.mxu0 0
  %750 = vmatprep.subr.bf16.mxu0 0
  %751 = vmatpush2.bf16.msra.mxu0 0
  %752 = vmatprep.subr.bf16.mxu0 0
  %753 = vmatpush2.bf16.msra.mxu0 0
  %754 = vmatprep.subr.bf16.mxu0 0
  %755 = vmatpush2.bf16.msra.mxu0 0
  %756 = vmatprep.mubr.bf16.mxu0 0
  %757 = vmatmul.mubr.bf16.gmra.mxu0 %v722
  %v758 = vpop.f32.mrf.mxu0
  %v759 = vadd.f32 %v717, %v758
  %v760 = vpop.f32.mrf.mxu0
  %v761 = vpop.f32.mrf.mxu0
  %v762 = vpop.f32.mrf.mxu0
  %763 = vdwg.mxu0
  %v764 = vtanh.pop %v759
  %v765 = vmul.f32 %v764, 0.5
  %v766 = vadd.f32 %v765, 0.5
  %v767 = vmul.f32 %v766, %v702
  %769 = vrot.lane.b32.xlu0 %v764, 96
  %v770 = vpop.permute.xlu0 %769
  %v772 = vmul.f32 %v766, %v770
  %774 = vrot.lane.b32.xlu0 %v772, 16
  %v775 = vpop.permute.xlu0 %774
  %v777 = vadd.f32 %v767, %v775
  %v778 = vtanh.pop %v777
  %780 = vrot.lane.b32.xlu0 %v778, 32
  %v781 = vpop.permute.xlu0 %780
  %v783 = vmul.f32 %v766, %v781
  %785 = vrot.lane.b32.xlu0 %v783, 80
  %v786 = vpop.permute.xlu0 %785
  %s788 = scalar_lea.vmem [#allocation3], 56
  %789 = vst.msk [vmem:[%s788] sm:$0xff] %vm196, %v786
  %790 = vst.msk [vmem:[%s9] sm:$0xff] %vm196, %v786
  %792 = vrot.lane.b32.xlu0 %v777, 112
  %v793 = vpop.permute.xlu0 %792
  %795 = vst.msk [vmem:[%s10] sm:$0xff] %vm196, %v793
  %v796 = vld [vmem:[#allocation3] sm:$0xff]
  %v797 = vld [vmem:[#allocation3 + $0x8] sm:$0xff]
  %v798 = vld [vmem:[#allocation3 + $0x10] sm:$0xff]
  %v799 = vld [vmem:[#allocation3 + $0x18] sm:$0xff]
  %v800 = vld [vmem:[#allocation3 + $0x20] sm:$0xff]
  %v801 = vld [vmem:[#allocation3 + $0x28] sm:$0xff]
  %v802 = vld [vmem:[#allocation3 + $0x30] sm:$0xff]
  %v803 = vld [vmem:[#allocation3 + $0x38] sm:$0xff]
  %v804 = vpack.c.bf16 %v797, %v796
  %v805 = vpack.c.bf16 %v799, %v798
  %v806 = vpack.c.bf16 %v801, %v800
  %v807 = vpack.c.bf16 %v803, %v802
  %v808 = vld [vmem:[%s4] sm:$0xf]
  %v809 = vld [vmem:[%s4 + $0x4] sm:$0xf]
  %v810 = vld [vmem:[%s5] sm:$0x1]
  %v812 = vlaneseq
  %v813 = vshrl.u32 %v812, 7
  %v814 = vsub.s32 0, %v813
  %v815 = vrot.slane %v810, %v814
  %v819 = vunpack.c.l.b16 %v808
  %v820 = vunpack.c.l.b16 %v809
  %v821 = vpack.c.b16 %v820, %v819
  %v824 = vsel %vm196, %v804, 0
  %v827 = vsel %vm196, %v805, 0
  %v830 = vsel %vm196, %v806, 0
  %v833 = vsel %vm196, %v807, 0
  %835 = vmatprep.subr.bf16.mxu0 0
  %836 = vmatpush1.bf16.msra.mxu0 0
  %837 = vmatprep.subr.bf16.mxu0 0
  %838 = vmatpush1.bf16.msra.mxu0 0
  %839 = vmatprep.subr.bf16.mxu0 0
  %840 = vmatpush1.bf16.msra.mxu0 0
  %841 = vmatprep.subr.bf16.mxu0 0
  %842 = vmatpush1.bf16.msra.mxu0 0
  %843 = vmatprep.subr.bf16.mxu0 0
  %844 = vmatpush1.bf16.msra.mxu0 0
  %845 = vmatprep.subr.bf16.mxu0 0
  %846 = vmatpush1.bf16.msra.mxu0 0
  %847 = vmatprep.subr.bf16.mxu0 0
  %848 = vmatpush1.bf16.msra.mxu0 0
  %849 = vmatprep.subr.bf16.mxu0 0
  %850 = vmatpush1.bf16.msra.mxu0 %v821
  %851 = vmatprep.subr.bf16.mxu0 0
  %852 = vmatpush2.bf16.msra.mxu0 0
  %853 = vmatprep.subr.bf16.mxu0 0
  %854 = vmatpush2.bf16.msra.mxu0 0
  %855 = vmatprep.subr.bf16.mxu0 0
  %856 = vmatpush2.bf16.msra.mxu0 0
  %857 = vmatprep.subr.bf16.mxu0 0
  %858 = vmatpush2.bf16.msra.mxu0 0
  %859 = vmatprep.subr.bf16.mxu0 0
  %860 = vmatpush2.bf16.msra.mxu0 0
  %861 = vmatprep.subr.bf16.mxu0 0
  %862 = vmatpush2.bf16.msra.mxu0 0
  %863 = vmatprep.subr.bf16.mxu0 0
  %864 = vmatpush2.bf16.msra.mxu0 0
  %865 = vmatprep.subr.bf16.mxu0 0
  %866 = vmatpush2.bf16.msra.mxu0 0
  %867 = vmatprep.mubr.bf16.mxu0 0
  %868 = vmatmul.mubr.bf16.gmra.mxu0 %v824
  %v869 = vpop.f32.mrf.mxu0
  %v870 = vadd.f32 %v815, %v869
  %v871 = vpop.f32.mrf.mxu0
  %v872 = vpop.f32.mrf.mxu0
  %v873 = vadd.f32 %v815, %v872
  %v874 = vpop.f32.mrf.mxu0
  %875 = vmatprep.mubr.bf16.mxu0 0
  %876 = vmatmul.mubr.bf16.gmra.mxu0 %v827
  %v877 = vpop.f32.mrf.mxu0
  %v878 = vadd.f32 %v815, %v877
  %v879 = vpop.f32.mrf.mxu0
  %v880 = vpop.f32.mrf.mxu0
  %v881 = vadd.f32 %v815, %v880
  %v882 = vpop.f32.mrf.mxu0
  %883 = vmatprep.mubr.bf16.mxu0 0
  %884 = vmatmul.mubr.bf16.gmra.mxu0 %v830
  %v885 = vpop.f32.mrf.mxu0
  %v886 = vadd.f32 %v815, %v885
  %v887 = vpop.f32.mrf.mxu0
  %v888 = vpop.f32.mrf.mxu0
  %v889 = vadd.f32 %v815, %v888
  %v890 = vpop.f32.mrf.mxu0
  %891 = vmatprep.mubr.bf16.mxu0 0
  %892 = vmatmul.mubr.bf16.gmra.mxu0 %v833
  %v893 = vpop.f32.mrf.mxu0
  %v894 = vadd.f32 %v815, %v893
  %v895 = vpop.f32.mrf.mxu0
  %v896 = vpop.f32.mrf.mxu0
  %v897 = vadd.f32 %v815, %v896
  %v898 = vpop.f32.mrf.mxu0
  %899 = vdwg.mxu0
  %v900 = vmax.f32 %v870, 0.0
  %v901 = vmax.f32 %v873, 0.0
  %v902 = vmax.f32 %v878, 0.0
  %v903 = vmax.f32 %v881, 0.0
  %v904 = vmax.f32 %v886, 0.0
  %v905 = vmax.f32 %v889, 0.0
  %v906 = vmax.f32 %v894, 0.0
  %v907 = vmax.f32 %v897, 0.0
  %v908 = vpack.c.bf16 %v901, %v900
  %v909 = vpack.c.bf16 %v903, %v902
  %v910 = vpack.c.bf16 %v905, %v904
  %v911 = vpack.c.bf16 %v907, %v906
  %v912 = vld [vmem:[%s6] sm:$0xf]
  %v913 = vld [vmem:[%s6 + $0x4] sm:$0xf]
  %v914 = vld [vmem:[%s6 + $0x8] sm:$0xf]
  %v915 = vld [vmem:[%s6 + $0xc] sm:$0xf]
  %v916 = vld [vmem:[%s6 + $0x10] sm:$0xf]
  %v917 = vld [vmem:[%s6 + $0x14] sm:$0xf]
  %v918 = vld [vmem:[%s6 + $0x18] sm:$0xf]
  %v919 = vld [vmem:[%s6 + $0x1c] sm:$0xf]
  %v920 = vld [vmem:[%s6 + $0x20] sm:$0xf]
  %v921 = vld [vmem:[%s6 + $0x24] sm:$0xf]
  %v922 = vld [vmem:[%s6 + $0x28] sm:$0xf]
  %v923 = vld [vmem:[%s6 + $0x2c] sm:$0xf]
  %v924 = vld [vmem:[%s6 + $0x30] sm:$0xf]
  %v925 = vld [vmem:[%s6 + $0x34] sm:$0xf]
  %v926 = vld [vmem:[%s6 + $0x38] sm:$0xf]
  %v927 = vld [vmem:[%s6 + $0x3c] sm:$0xf]
  %v928 = vld [vmem:[%s7] sm:$0x1]
  %v930 = vlaneseq
  %v931 = vshrl.u32 %v930, 7
  %v932 = vsub.s32 0, %v931
  %v933 = vrot.slane %v928, %v932
  %v951 = vunpack.c.l.b16 %v912
  %v952 = vunpack.c.l.b16 %v913
  %v953 = vunpack.c.l.b16 %v914
  %v954 = vunpack.c.l.b16 %v915
  %v955 = vunpack.c.l.b16 %v916
  %v956 = vunpack.c.l.b16 %v917
  %v957 = vunpack.c.l.b16 %v918
  %v958 = vunpack.c.l.b16 %v919
  %v959 = vunpack.c.l.b16 %v920
  %v960 = vunpack.c.l.b16 %v921
  %v961 = vunpack.c.l.b16 %v922
  %v962 = vunpack.c.l.b16 %v923
  %v963 = vunpack.c.l.b16 %v924
  %v964 = vunpack.c.l.b16 %v925
  %v965 = vunpack.c.l.b16 %v926
  %v966 = vunpack.c.l.b16 %v927
  %v967 = vpack.c.b16 %v952, %v951
  %v968 = vpack.c.b16 %v954, %v953
  %v969 = vpack.c.b16 %v956, %v955
  %v970 = vpack.c.b16 %v958, %v957
  %v971 = vpack.c.b16 %v960, %v959
  %v972 = vpack.c.b16 %v962, %v961
  %v973 = vpack.c.b16 %v964, %v963
  %v974 = vpack.c.b16 %v966, %v965
  %983 = vmatprep.subr.bf16.mxu0 0
  %984 = vmatpush1.bf16.msra.mxu0 %v974
  %985 = vmatprep.subr.bf16.mxu0 0
  %986 = vmatpush1.bf16.msra.mxu0 %v973
  %987 = vmatprep.subr.bf16.mxu0 0
  %988 = vmatpush1.bf16.msra.mxu0 %v972
  %989 = vmatprep.subr.bf16.mxu0 0
  %990 = vmatpush1.bf16.msra.mxu0 %v971
  %991 = vmatprep.subr.bf16.mxu0 0
  %992 = vmatpush1.bf16.msra.mxu0 %v970
  %993 = vmatprep.subr.bf16.mxu0 0
  %994 = vmatpush1.bf16.msra.mxu0 %v969
  %995 = vmatprep.subr.bf16.mxu0 0
  %996 = vmatpush1.bf16.msra.mxu0 %v968
  %997 = vmatprep.subr.bf16.mxu0 0
  %998 = vmatpush1.bf16.msra.mxu0 %v967
  %999 = vmatprep.subr.bf16.mxu0 0
  %1000 = vmatpush2.bf16.msra.mxu0 0
  %1001 = vmatprep.subr.bf16.mxu0 0
  %1002 = vmatpush2.bf16.msra.mxu0 0
  %1003 = vmatprep.subr.bf16.mxu0 0
  %1004 = vmatpush2.bf16.msra.mxu0 0
  %1005 = vmatprep.subr.bf16.mxu0 0
  %1006 = vmatpush2.bf16.msra.mxu0 0
  %1007 = vmatprep.subr.bf16.mxu0 0
  %1008 = vmatpush2.bf16.msra.mxu0 0
  %1009 = vmatprep.subr.bf16.mxu0 0
  %1010 = vmatpush2.bf16.msra.mxu0 0
  %1011 = vmatprep.subr.bf16.mxu0 0
  %1012 = vmatpush2.bf16.msra.mxu0 0
  %1013 = vmatprep.subr.bf16.mxu0 0
  %1014 = vmatpush2.bf16.msra.mxu0 0
  %1015 = vmatprep.mubr.bf16.mxu0 0
  %1016 = vmatmul.mubr.bf16.gmra.mxu0 %v908
  %v1017 = vpop.f32.mrf.mxu0
  %v1018 = vadd.f32 %v933, %v1017
  %v1019 = vpop.f32.mrf.mxu0
  %v1020 = vpop.f32.mrf.mxu0
  %v1021 = vadd.f32 %v933, %v1020
  %v1022 = vpop.f32.mrf.mxu0
  %1023 = vmatprep.mubr.bf16.mxu0 0
  %1024 = vmatmul.mubr.bf16.gmra.mxu0 %v909
  %v1025 = vpop.f32.mrf.mxu0
  %v1026 = vadd.f32 %v933, %v1025
  %v1027 = vpop.f32.mrf.mxu0
  %v1028 = vpop.f32.mrf.mxu0
  %v1029 = vadd.f32 %v933, %v1028
  %v1030 = vpop.f32.mrf.mxu0
  %1031 = vmatprep.mubr.bf16.mxu0 0
  %1032 = vmatmul.mubr.bf16.gmra.mxu0 %v910
  %v1033 = vpop.f32.mrf.mxu0
  %v1034 = vadd.f32 %v933, %v1033
  %v1035 = vpop.f32.mrf.mxu0
  %v1036 = vpop.f32.mrf.mxu0
  %v1037 = vadd.f32 %v933, %v1036
  %v1038 = vpop.f32.mrf.mxu0
  %1039 = vmatprep.mubr.bf16.mxu0 0
  %1040 = vmatmul.mubr.bf16.gmra.mxu0 %v911
  %v1041 = vpop.f32.mrf.mxu0
  %v1042 = vadd.f32 %v933, %v1041
  %v1043 = vpop.f32.mrf.mxu0
  %v1044 = vpop.f32.mrf.mxu0
  %v1045 = vadd.f32 %v933, %v1044
  %v1046 = vpop.f32.mrf.mxu0
  %1047 = vdwg.mxu0
  %1048 = vst [vmem:[%s8] sm:$0xff] %v1018
  %1049 = vst [vmem:[%s8 + $0x8] sm:$0xff] %v1021
  %1050 = vst [vmem:[%s8 + $0x10] sm:$0xff] %v1026
  %1051 = vst [vmem:[%s8 + $0x18] sm:$0xff] %v1029
  %1052 = vst [vmem:[%s8 + $0x20] sm:$0xff] %v1034
  %1053 = vst [vmem:[%s8 + $0x28] sm:$0xff] %v1037
  %1054 = vst [vmem:[%s8 + $0x30] sm:$0xff] %v1042
  %1055 = vst [vmem:[%s8 + $0x38] sm:$0xff] %v1045
  // Predicated region
  $region34: #{lstm_forward.1} parent=0 // pred_check
    _
  $region35: #{lstm_forward.1} parent=0 // pred_check_branch
    %1057 = sbr.rel (0) target = $region37
  $region36: #{lstm_forward.1} parent=0 // pred_region
    _
  $region37: #{lstm_forward.1} parent=0 // pred_fallthru
    _
  // Predicated region
  $region38: #{lstm_forward.1} parent=0 // pred_check
    _
  $region39: #{lstm_forward.1} parent=0 // pred_check_branch
    %1059 = sbr.rel (0) target = $region41
  $region40: #{lstm_forward.1} parent=0 // pred_region
    _
  $region41: #{lstm_forward.1} parent=0 // pred_fallthru
    _
  // Predicated region
  $region42: #{lstm_forward.1} parent=0 // pred_check
    _
  $region43: #{lstm_forward.1} parent=0 // pred_check_branch
    %1061 = sbr.rel (0) target = $region45
  $region44: #{lstm_forward.1} parent=0 // pred_region
    _
  $region45: #{lstm_forward.1} parent=0 // pred_fallthru
    _
  // Predicated region
  $region46: #{lstm_forward.1} parent=0 // pred_check
    _
  $region47: #{lstm_forward.1} parent=0 // pred_check_branch
    %1063 = sbr.rel (0) target = $region49
  $region48: #{lstm_forward.1} parent=0 // pred_region
    _
  $region49: #{lstm_forward.1} parent=0 // pred_fallthru
    _
  // Predicated region
  $region50: #{lstm_forward.1} parent=0 // pred_check
    _
  $region51: #{lstm_forward.1} parent=0 // pred_check_branch
    %1065 = sbr.rel (0) target = $region53
  $region52: #{lstm_forward.1} parent=0 // pred_region
    _
  $region53: #{lstm_forward.1} parent=0 // pred_fallthru
    _
  // Predicated region
  $region54: #{lstm_forward.1} parent=0 // pred_check
    _
  $region55: #{lstm_forward.1} parent=0 // pred_check_branch
    %1067 = sbr.rel (0) target = $region57
  $region56: #{lstm_forward.1} parent=0 // pred_region
    _
  $region57: #{lstm_forward.1} parent=0 // pred_fallthru
    _

</llo_original>
